<compile_context>
chip_gen: v7x
topology: tpu7x:2x2x1
jax: 0.10.0
libtpu: 0.0.40
codegen_flags: <defaults>
</compile_context>

<pallas_src>
import math
import functools

import jax
import jax.numpy as jnp
from jax import lax
from jax.experimental import pallas as pl
from jax.experimental.pallas import tpu as pltpu


# ----------------------------- fused Pallas kernel -----------------------------

def _mha_fused_kernel(q_ref, k_ref, v_ref, vl_ref,
                      wq_ref, wk_ref, wv_ref, wo_ref,
                      o_ref, oheads_ref, *, num_heads):
    """One grid step == one batch block; all projections + all heads fused.

    q_ref  : (Bb, n_q, dq)   k_ref: (Bb, n_kv, dk)   v_ref: (Bb, n_kv, dv)
    vl_ref : (Bb, n_q, 1) int32 valid lengths (VMEM)
    wq_ref : (dq, H)  (softmax scale pre-folded)   wk_ref: (dk, H)   wv_ref: (dv, H)
    wo_ref : (H, H)
    o_ref  : (Bb, n_q, H)
    oheads_ref : (Bb, n_q, H) f32 VMEM scratch (per-head outputs, lane-concatenated)
    """
    Bb, n_q, dq = q_ref.shape
    _, n_kv, dk = k_ref.shape
    dv = v_ref.shape[-1]
    H = wo_ref.shape[0]
    hd = H // num_heads
    cdt = q_ref.dtype   # MXU operand dtype follows the inputs (bf16 path supported)

    # ---- Q/K/V projections once at full width (dense MXU: K=d_in, N=H;
    #      batch block stacked on the sublane axis).
    q2 = q_ref[...].reshape(Bb * n_q, dq)
    k2 = k_ref[...].reshape(Bb * n_kv, dk)
    v2 = v_ref[...].reshape(Bb * n_kv, dv)
    qp = jnp.dot(q2, wq_ref[...], preferred_element_type=jnp.float32)   # (Bb*n_q, H)
    kp = jnp.dot(k2, wk_ref[...], preferred_element_type=jnp.float32)   # (Bb*n_kv, H)
    vp = jnp.dot(v2, wv_ref[...], preferred_element_type=jnp.float32)   # (Bb*n_kv, H)

    # ---- validity mask: one broadcast compare per batch element (no select chain).
    col = lax.broadcasted_iota(jnp.int32, (n_q, n_kv), 1)

    for b in range(Bb):
        valid = col < vl_ref[b]                              # (n_q, n_kv)
        qb = qp[b * n_q:(b + 1) * n_q]
        kb = kp[b * n_kv:(b + 1) * n_kv]
        vb = vp[b * n_kv:(b + 1) * n_kv]
        # TODO(synk): for large num_heads switch to lax.fori_loop(..., unroll=True)
        # to bound vreg live ranges; static unroll is fine at h=4.
        for i in range(num_heads):
            sl = slice(i * hd, (i + 1) * hd)
            qh = qb[:, sl].astype(cdt)
            kh = kb[:, sl].astype(cdt)
            vh = vb[:, sl].astype(cdt)

            # Scores: contract both last dims -> no explicit k.T / XLU transpose.
            s = lax.dot_general(qh, kh, (((1,), (1,)), ((), ())),
                                preferred_element_type=jnp.float32)      # (n_q, n_kv)

            # masked_softmax in f32 (d2l semantics: invalid logits set to -1e20;
            # a fully-masked row yields a uniform distribution, matching the ref).
            s = jnp.where(valid, s, jnp.float32(-1e20))
            s = s - jnp.max(s, axis=-1, keepdims=True)
            p = jnp.exp(s)
            p = p / jnp.sum(p, axis=-1, keepdims=True)       # exact division (tight parity)

            # Attention pool; per-head slab written into its lane slice of the
            # concat buffer (head i owns output channels [i*hd, (i+1)*hd)).
            oh = jnp.dot(p.astype(cdt), vh, preferred_element_type=jnp.float32)
            oheads_ref[b, :, sl] = oh

    # ---- output projection once at full width: (Bb*n_q, H) @ (H, H).
    oc = oheads_ref[...].reshape(Bb * n_q, H).astype(wo_ref.dtype)
    out = jnp.dot(oc, wo_ref[...], preferred_element_type=jnp.float32)

    # TODO(synk): nn.Dropout on attention weights is identity in eval mode; not emitted.
    # NOTE: for production configs keep H a multiple of 128 (lane-dense stores).
    o_ref[...] = out.reshape(Bb, n_q, H).astype(o_ref.dtype)


# ------------------------------ wrapper (plain JAX) -----------------------------

def multi_head_attention(params, num_heads, Q_batch, K_batch, V_batch, valid_lens=None,
                         *, batch_block=None, compute_dtype=None):
    """Forward pass matching the PyTorch MultiHeadAttention (dropout in eval mode).

    compute_dtype: optional MXU operand dtype (e.g. jnp.bfloat16 on v6e/v7x);
                   defaults to the input dtype. Softmax math is always f32.
    batch_block  : batch elements per grid step. Default keeps at most 2 grid steps.
    """
    h = num_heads
    B, n_q, dq = Q_batch.shape
    _, n_kv, dk = K_batch.shape
    dv = V_batch.shape[-1]
    H = params["W_q"].shape[1]
    assert H % h == 0
    hd = H // h
    scale = 1.0 / math.sqrt(hd)   # per-head dim, as in the reference

    if batch_block is None:
        # <=2 grid steps: amortizes the ~0.35us fixed per-step cost on single-TC
        # chips (v5e/v6e) while still giving v7x's 2 TensorCores work.
        batch_block = max(1, pl.cdiv(B, 2))
    batch_block = min(batch_block, B)
    grid = (pl.cdiv(B, batch_block),)

    cdt = compute_dtype if compute_dtype is not None else Q_batch.dtype

    # Normalize valid_lens (None / (B,) / (B, n_q)) to a (B, n_q, 1) int32 table.
    # All heads of a batch share that batch's lengths (== torch repeat_interleave(h)).
    if valid_lens is None:
        vl2d = jnp.full((B, n_q), n_kv, dtype=jnp.int32)
    else:
        vl = valid_lens.astype(jnp.int32)
        vl2d = jnp.broadcast_to(vl[:, None], (B, n_q)) if vl.ndim == 1 else vl
    vl3d = vl2d.reshape(B, n_q, 1)

    # Weights stay 2-D (d_in, H), contiguous; softmax scale folded into W_q.
    wq = (params["W_q"] * scale).astype(cdt)
    wk = params["W_k"].astype(cdt)
    wv = params["W_v"].astype(cdt)
    wo = params["W_o"].astype(cdt)
    q = Q_batch.astype(cdt)
    k = K_batch.astype(cdt)
    v = V_batch.astype(cdt)

    kernel = functools.partial(_mha_fused_kernel, num_heads=h)

    return pl.pallas_call(
        kernel,
        out_shape=jax.ShapeDtypeStruct((B, n_q, H), Q_batch.dtype),
        grid_spec=pltpu.PrefetchScalarGridSpec(
            num_scalar_prefetch=0,
            grid=grid,
            in_specs=[
                pl.BlockSpec((batch_block, n_q, dq), lambda b: (b, 0, 0)),
                pl.BlockSpec((batch_block, n_kv, dk), lambda b: (b, 0, 0)),
                pl.BlockSpec((batch_block, n_kv, dv), lambda b: (b, 0, 0)),
                pl.BlockSpec((batch_block, n_q, 1), lambda b: (b, 0, 0)),
                # Weight specs have constant index maps (resident across steps).
                pl.BlockSpec((dq, H), lambda b: (0, 0)),
                pl.BlockSpec((dk, H), lambda b: (0, 0)),
                pl.BlockSpec((dv, H), lambda b: (0, 0)),
                pl.BlockSpec((H, H), lambda b: (0, 0)),
            ],
            out_specs=pl.BlockSpec((batch_block, n_q, H), lambda b: (b, 0, 0)),
            scratch_shapes=[pltpu.VMEM((batch_block, n_q, H), jnp.float32)],
        ),
        compiler_params=pltpu.CompilerParams(
            dimension_semantics=("parallel",),   # batch-block axis shards across TCs
        ),
    )(q, k, v, vl3d, wq, wk, wv, wo)


# --------------------------------- params init ----------------------------------

def init_mha_params(key, query_size, key_size, value_size, num_hiddens):
    """Deterministic params; weights stored as (in_features, out_features)."""
    kq, kk, kv, ko = jax.random.split(key, 4)

    def _init(k, fan_in, fan_out):
        bound = 1.0 / math.sqrt(fan_in)
        return jax.random.uniform(
            k, (fan_in, fan_out), jnp.float32, minval=-bound, maxval=bound
        )

    return {
        "W_q": _init(kq, query_size, num_hiddens),
        "W_k": _init(kk, key_size, num_hiddens),
        "W_v": _init(kv, value_size, num_hiddens),
        "W_o": _init(ko, num_hiddens, num_hiddens),
    }


# ---------------------------------- reference ------------------------------------

def _reference(params, num_heads, Qb, Kb, Vb, valid_lens):
    h = num_heads

    def t_qkv(X):
        B, n, H = X.shape
        return X.reshape(B, n, h, H // h).transpose(0, 2, 1, 3).reshape(B * h, n, H // h)

    Q = t_qkv(Qb @ params["W_q"])
    K = t_qkv(Kb @ params["W_k"])
    V = t_qkv(Vb @ params["W_v"])
    BH, n_q, d = Q.shape
    n_kv = K.shape[1]
    S = jnp.einsum("bqd,bkd->bqk", Q, K) / math.sqrt(d)
    if valid_lens is None:
        vl2 = jnp.full((BH, n_q), n_kv, dtype=jnp.int32)
    else:
        vl = jnp.repeat(valid_lens, h, axis=0)
        vl2 = jnp.broadcast_to(vl[:, None], (BH, n_q)) if vl.ndim == 1 else vl
    col = jnp.arange(n_kv)[None, None, :]
    S = jnp.where(col < vl2[:, :, None], S, -1e20)
    W = jax.nn.softmax(S, axis=-1)
    O = jnp.einsum("bqk,bkv->bqv", W, V)
    B = BH // h
    O = O.reshape(B, h, n_q, d).transpose(0, 2, 1, 3).reshape(B, n_q, h * d)
    return O @ params["W_o"]


# ------------------------------------ main ----------------------------------------

if __name__ == "__main__":
    key = jax.random.PRNGKey(0)
    k_params, k_q, k_k, k_v = jax.random.split(key, 4)

    batch = 2
    n_queries = 8
    n_kvs = 8
    query_size = 16
    key_size = 16
    value_size = 16
    num_hiddens = 32
    num_heads = 4

    params = init_mha_params(k_params, query_size, key_size, value_size, num_hiddens)

    Q_batch = jax.random.normal(k_q, (batch, n_queries, query_size), jnp.float32)
    K_batch = jax.random.normal(k_k, (batch, n_kvs, key_size), jnp.float32)
    V_batch = jax.random.normal(k_v, (batch, n_kvs, value_size), jnp.float32)
    valid_lens = jnp.array([5, 7], dtype=jnp.int32)

    ref = _reference(params, num_heads, Q_batch, K_batch, V_batch, valid_lens)

    # Default blocking: one batch element per grid step (2 steps -> both v7x TCs).
    out = multi_head_attention(params, num_heads, Q_batch, K_batch, V_batch, valid_lens)
    out = jax.block_until_ready(out)
    assert out.shape == (batch, n_queries, num_hiddens)
    assert jnp.allclose(out, ref, atol=1e-4, rtol=1e-4), "mismatch vs JAX reference"

    # Whole batch in a single grid step (best on single-TensorCore v5e/v6e).
    out1 = multi_head_attention(params, num_heads, Q_batch, K_batch, V_batch, valid_lens,
                                batch_block=batch)
    out1 = jax.block_until_ready(out1)
    assert jnp.allclose(out1, ref, atol=1e-4, rtol=1e-4), "mismatch (batch_block=B)"

    print("KERNEL_OK")
</pallas_src>

<mosaic_0001>
module attributes {stable_mosaic.version = 11 : i64} {
  func.func @_mha_fused_kernel(%arg0: i32, %arg1: memref<1x8x16xf32, #tpu.memory_space<vmem>>, %arg2: memref<1x8x16xf32, #tpu.memory_space<vmem>>, %arg3: memref<1x8x16xf32, #tpu.memory_space<vmem>>, %arg4: memref<1x8x1xi32, #tpu.memory_space<vmem>>, %arg5: memref<16x32xf32, #tpu.memory_space<vmem>>, %arg6: memref<16x32xf32, #tpu.memory_space<vmem>>, %arg7: memref<16x32xf32, #tpu.memory_space<vmem>>, %arg8: memref<32x32xf32, #tpu.memory_space<vmem>>, %arg9: memref<1x8x32xf32, #tpu.memory_space<vmem>>, %arg10: memref<1x8x32xf32, #tpu.memory_space<vmem>>) attributes {dimension_semantics = [#tpu.dimension_semantics<parallel>], iteration_bounds = array<i64: 2>, scalar_prefetch = 0 : i64, scratch_operands = 1 : i64, tpu.core_type = #tpu.core_type<tc>, window_params = [{transform_indices = @transform_0, window_bounds = array<i64: 1, 8, 16>}, {transform_indices = @transform_1, window_bounds = array<i64: 1, 8, 16>}, {transform_indices = @transform_2, window_bounds = array<i64: 1, 8, 16>}, {transform_indices = @transform_3, window_bounds = array<i64: 1, 8, 1>}, {pipeline_mode = #tpu.pipeline_mode<synchronous>, transform_indices = @transform_4, window_bounds = array<i64: 16, 32>}, {pipeline_mode = #tpu.pipeline_mode<synchronous>, transform_indices = @transform_5, window_bounds = array<i64: 16, 32>}, {pipeline_mode = #tpu.pipeline_mode<synchronous>, transform_indices = @transform_6, window_bounds = array<i64: 16, 32>}, {pipeline_mode = #tpu.pipeline_mode<synchronous>, transform_indices = @transform_7, window_bounds = array<i64: 32, 32>}, {transform_indices = @transform_8, window_bounds = array<i64: 1, 8, 32>}]} {
    %c0 = arith.constant 0 : index
    %c0_0 = arith.constant 0 : index
    %c0_1 = arith.constant 0 : index
    %0 = vector.load %arg1[%c0, %c0_0, %c0_1] : memref<1x8x16xf32, #tpu.memory_space<vmem>>, vector<1x8x16xf32>
    %1 = vector.shape_cast %0 : vector<1x8x16xf32> to vector<8x16xf32>
    %c0_2 = arith.constant 0 : index
    %c0_3 = arith.constant 0 : index
    %c0_4 = arith.constant 0 : index
    %2 = vector.load %arg2[%c0_2, %c0_3, %c0_4] : memref<1x8x16xf32, #tpu.memory_space<vmem>>, vector<1x8x16xf32>
    %3 = vector.shape_cast %2 : vector<1x8x16xf32> to vector<8x16xf32>
    %c0_5 = arith.constant 0 : index
    %c0_6 = arith.constant 0 : index
    %c0_7 = arith.constant 0 : index
    %4 = vector.load %arg3[%c0_5, %c0_6, %c0_7] : memref<1x8x16xf32, #tpu.memory_space<vmem>>, vector<1x8x16xf32>
    %5 = vector.shape_cast %4 : vector<1x8x16xf32> to vector<8x16xf32>
    %c0_8 = arith.constant 0 : index
    %c0_9 = arith.constant 0 : index
    %6 = vector.load %arg5[%c0_8, %c0_9] : memref<16x32xf32, #tpu.memory_space<vmem>>, vector<16x32xf32>
    %cst = arith.constant dense<0.000000e+00> : vector<8x32xf32>
    %7 = tpu.matmul %1, %6, %cst {dimension_numbers = #tpu.dot_dimension_numbers<[1], [0], [0], [1], [0, 0, 1, 1], [], []>} : vector<8x16xf32>, vector<16x32xf32>, vector<8x32xf32> -> vector<8x32xf32>
    %c0_10 = arith.constant 0 : index
    %c0_11 = arith.constant 0 : index
    %8 = vector.load %arg6[%c0_10, %c0_11] : memref<16x32xf32, #tpu.memory_space<vmem>>, vector<16x32xf32>
    %cst_12 = arith.constant dense<0.000000e+00> : vector<8x32xf32>
    %9 = tpu.matmul %3, %8, %cst_12 {dimension_numbers = #tpu.dot_dimension_numbers<[1], [0], [0], [1], [0, 0, 1, 1], [], []>} : vector<8x16xf32>, vector<16x32xf32>, vector<8x32xf32> -> vector<8x32xf32>
    %c0_13 = arith.constant 0 : index
    %c0_14 = arith.constant 0 : index
    %10 = vector.load %arg7[%c0_13, %c0_14] : memref<16x32xf32, #tpu.memory_space<vmem>>, vector<16x32xf32>
    %cst_15 = arith.constant dense<0.000000e+00> : vector<8x32xf32>
    %11 = tpu.matmul %5, %10, %cst_15 {dimension_numbers = #tpu.dot_dimension_numbers<[1], [0], [0], [1], [0, 0, 1, 1], [], []>} : vector<8x16xf32>, vector<16x32xf32>, vector<8x32xf32> -> vector<8x32xf32>
    %12 = tpu.iota {dimensions = array<i32: 1>} : vector<8x8xi32>
    %c0_16 = arith.constant 0 : index
    %c0_17 = arith.constant 0 : index
    %c0_18 = arith.constant 0 : index
    %13 = vector.load %arg4[%c0_16, %c0_17, %c0_18] : memref<1x8x1xi32, #tpu.memory_space<vmem>>, vector<1x8x1xi32>
    %14 = vector.shape_cast %13 : vector<1x8x1xi32> to vector<8x1xi32>
    %15 = vector.broadcast %14 : vector<8x1xi32> to vector<8x8xi32>
    %16 = arith.cmpi slt, %12, %15 : vector<8x8xi32>
    %17 = vector.extract_strided_slice %7 {offsets = [0, 0], sizes = [8, 8], strides = [1, 1]} : vector<8x32xf32> to vector<8x8xf32>
    %18 = vector.extract_strided_slice %9 {offsets = [0, 0], sizes = [8, 8], strides = [1, 1]} : vector<8x32xf32> to vector<8x8xf32>
    %19 = vector.extract_strided_slice %11 {offsets = [0, 0], sizes = [8, 8], strides = [1, 1]} : vector<8x32xf32> to vector<8x8xf32>
    %cst_19 = arith.constant dense<0.000000e+00> : vector<8x8xf32>
    %20 = tpu.matmul %17, %18, %cst_19 {dimension_numbers = #tpu.dot_dimension_numbers<[1], [1], [0], [0], [0, 0, 1, 0], [], []>} : vector<8x8xf32>, vector<8x8xf32>, vector<8x8xf32> -> vector<8x8xf32>
    %cst_20 = arith.constant -1.000000e+20 : f32
    %21 = vector.broadcast %cst_20 : f32 to vector<8x8xf32>
    %22 = arith.select %16, %20, %21 : vector<8x8xi1>, vector<8x8xf32>
    %cst_21 = arith.constant dense<0xFF800000> : vector<8xf32>
    %23 = vector.multi_reduction <maximumf>, %22, %cst_21 [1] : vector<8x8xf32> to vector<8xf32>
    %24 = vector.shape_cast %23 : vector<8xf32> to vector<8x1xf32>
    %25 = vector.broadcast %24 : vector<8x1xf32> to vector<8x8xf32>
    %26 = arith.subf %22, %25 : vector<8x8xf32>
    %27 = math.exp %26 : vector<8x8xf32>
    %cst_22 = arith.constant dense<0.000000e+00> : vector<8xf32>
    %28 = vector.multi_reduction <add>, %27, %cst_22 [1] : vector<8x8xf32> to vector<8xf32>
    %29 = vector.shape_cast %28 : vector<8xf32> to vector<8x1xf32>
    %30 = vector.broadcast %29 : vector<8x1xf32> to vector<8x8xf32>
    %31 = arith.divf %27, %30 : vector<8x8xf32>
    %cst_23 = arith.constant dense<0.000000e+00> : vector<8x8xf32>
    %32 = tpu.matmul %31, %19, %cst_23 {dimension_numbers = #tpu.dot_dimension_numbers<[1], [0], [0], [1], [0, 0, 1, 1], [], []>} : vector<8x8xf32>, vector<8x8xf32>, vector<8x8xf32> -> vector<8x8xf32>
    %c0_24 = arith.constant 0 : index
    %c0_25 = arith.constant 0 : index
    %c0_26 = arith.constant 0 : index
    %33 = vector.load %arg10[%c0_24, %c0_25, %c0_26] : memref<1x8x32xf32, #tpu.memory_space<vmem>>, vector<1x8x8xf32>
    %34 = vector.shape_cast %33 : vector<1x8x8xf32> to vector<8x8xf32>
    %35 = vector.shape_cast %32 : vector<8x8xf32> to vector<1x8x8xf32>
    tpu.vector_store %arg10[%c0_24, %c0_25, %c0_26], %35 {strides = array<i32>} : memref<1x8x32xf32, #tpu.memory_space<vmem>>, vector<1x8x8xf32>,
    %36 = vector.extract_strided_slice %7 {offsets = [0, 8], sizes = [8, 8], strides = [1, 1]} : vector<8x32xf32> to vector<8x8xf32>
    %37 = vector.extract_strided_slice %9 {offsets = [0, 8], sizes = [8, 8], strides = [1, 1]} : vector<8x32xf32> to vector<8x8xf32>
    %38 = vector.extract_strided_slice %11 {offsets = [0, 8], sizes = [8, 8], strides = [1, 1]} : vector<8x32xf32> to vector<8x8xf32>
    %cst_27 = arith.constant dense<0.000000e+00> : vector<8x8xf32>
    %39 = tpu.matmul %36, %37, %cst_27 {dimension_numbers = #tpu.dot_dimension_numbers<[1], [1], [0], [0], [0, 0, 1, 0], [], []>} : vector<8x8xf32>, vector<8x8xf32>, vector<8x8xf32> -> vector<8x8xf32>
    %cst_28 = arith.constant -1.000000e+20 : f32
    %40 = vector.broadcast %cst_28 : f32 to vector<8x8xf32>
    %41 = arith.select %16, %39, %40 : vector<8x8xi1>, vector<8x8xf32>
    %cst_29 = arith.constant dense<0xFF800000> : vector<8xf32>
    %42 = vector.multi_reduction <maximumf>, %41, %cst_29 [1] : vector<8x8xf32> to vector<8xf32>
    %43 = vector.shape_cast %42 : vector<8xf32> to vector<8x1xf32>
    %44 = vector.broadcast %43 : vector<8x1xf32> to vector<8x8xf32>
    %45 = arith.subf %41, %44 : vector<8x8xf32>
    %46 = math.exp %45 : vector<8x8xf32>
    %cst_30 = arith.constant dense<0.000000e+00> : vector<8xf32>
    %47 = vector.multi_reduction <add>, %46, %cst_30 [1] : vector<8x8xf32> to vector<8xf32>
    %48 = vector.shape_cast %47 : vector<8xf32> to vector<8x1xf32>
    %49 = vector.broadcast %48 : vector<8x1xf32> to vector<8x8xf32>
    %50 = arith.divf %46, %49 : vector<8x8xf32>
    %cst_31 = arith.constant dense<0.000000e+00> : vector<8x8xf32>
    %51 = tpu.matmul %50, %38, %cst_31 {dimension_numbers = #tpu.dot_dimension_numbers<[1], [0], [0], [1], [0, 0, 1, 1], [], []>} : vector<8x8xf32>, vector<8x8xf32>, vector<8x8xf32> -> vector<8x8xf32>
    %c0_32 = arith.constant 0 : index
    %c0_33 = arith.constant 0 : index
    %c8 = arith.constant 8 : index
    %52 = vector.load %arg10[%c0_32, %c0_33, %c8] : memref<1x8x32xf32, #tpu.memory_space<vmem>>, vector<1x8x8xf32>
    %53 = vector.shape_cast %52 : vector<1x8x8xf32> to vector<8x8xf32>
    %54 = vector.shape_cast %51 : vector<8x8xf32> to vector<1x8x8xf32>
    tpu.vector_store %arg10[%c0_32, %c0_33, %c8], %54 {strides = array<i32>} : memref<1x8x32xf32, #tpu.memory_space<vmem>>, vector<1x8x8xf32>,
    %55 = vector.extract_strided_slice %7 {offsets = [0, 16], sizes = [8, 8], strides = [1, 1]} : vector<8x32xf32> to vector<8x8xf32>
    %56 = vector.extract_strided_slice %9 {offsets = [0, 16], sizes = [8, 8], strides = [1, 1]} : vector<8x32xf32> to vector<8x8xf32>
    %57 = vector.extract_strided_slice %11 {offsets = [0, 16], sizes = [8, 8], strides = [1, 1]} : vector<8x32xf32> to vector<8x8xf32>
    %cst_34 = arith.constant dense<0.000000e+00> : vector<8x8xf32>
    %58 = tpu.matmul %55, %56, %cst_34 {dimension_numbers = #tpu.dot_dimension_numbers<[1], [1], [0], [0], [0, 0, 1, 0], [], []>} : vector<8x8xf32>, vector<8x8xf32>, vector<8x8xf32> -> vector<8x8xf32>
    %cst_35 = arith.constant -1.000000e+20 : f32
    %59 = vector.broadcast %cst_35 : f32 to vector<8x8xf32>
    %60 = arith.select %16, %58, %59 : vector<8x8xi1>, vector<8x8xf32>
    %cst_36 = arith.constant dense<0xFF800000> : vector<8xf32>
    %61 = vector.multi_reduction <maximumf>, %60, %cst_36 [1] : vector<8x8xf32> to vector<8xf32>
    %62 = vector.shape_cast %61 : vector<8xf32> to vector<8x1xf32>
    %63 = vector.broadcast %62 : vector<8x1xf32> to vector<8x8xf32>
    %64 = arith.subf %60, %63 : vector<8x8xf32>
    %65 = math.exp %64 : vector<8x8xf32>
    %cst_37 = arith.constant dense<0.000000e+00> : vector<8xf32>
    %66 = vector.multi_reduction <add>, %65, %cst_37 [1] : vector<8x8xf32> to vector<8xf32>
    %67 = vector.shape_cast %66 : vector<8xf32> to vector<8x1xf32>
    %68 = vector.broadcast %67 : vector<8x1xf32> to vector<8x8xf32>
    %69 = arith.divf %65, %68 : vector<8x8xf32>
    %cst_38 = arith.constant dense<0.000000e+00> : vector<8x8xf32>
    %70 = tpu.matmul %69, %57, %cst_38 {dimension_numbers = #tpu.dot_dimension_numbers<[1], [0], [0], [1], [0, 0, 1, 1], [], []>} : vector<8x8xf32>, vector<8x8xf32>, vector<8x8xf32> -> vector<8x8xf32>
    %c0_39 = arith.constant 0 : index
    %c0_40 = arith.constant 0 : index
    %c16 = arith.constant 16 : index
    %71 = vector.load %arg10[%c0_39, %c0_40, %c16] : memref<1x8x32xf32, #tpu.memory_space<vmem>>, vector<1x8x8xf32>
    %72 = vector.shape_cast %71 : vector<1x8x8xf32> to vector<8x8xf32>
    %73 = vector.shape_cast %70 : vector<8x8xf32> to vector<1x8x8xf32>
    tpu.vector_store %arg10[%c0_39, %c0_40, %c16], %73 {strides = array<i32>} : memref<1x8x32xf32, #tpu.memory_space<vmem>>, vector<1x8x8xf32>,
    %74 = vector.extract_strided_slice %7 {offsets = [0, 24], sizes = [8, 8], strides = [1, 1]} : vector<8x32xf32> to vector<8x8xf32>
    %75 = vector.extract_strided_slice %9 {offsets = [0, 24], sizes = [8, 8], strides = [1, 1]} : vector<8x32xf32> to vector<8x8xf32>
    %76 = vector.extract_strided_slice %11 {offsets = [0, 24], sizes = [8, 8], strides = [1, 1]} : vector<8x32xf32> to vector<8x8xf32>
    %cst_41 = arith.constant dense<0.000000e+00> : vector<8x8xf32>
    %77 = tpu.matmul %74, %75, %cst_41 {dimension_numbers = #tpu.dot_dimension_numbers<[1], [1], [0], [0], [0, 0, 1, 0], [], []>} : vector<8x8xf32>, vector<8x8xf32>, vector<8x8xf32> -> vector<8x8xf32>
    %cst_42 = arith.constant -1.000000e+20 : f32
    %78 = vector.broadcast %cst_42 : f32 to vector<8x8xf32>
    %79 = arith.select %16, %77, %78 : vector<8x8xi1>, vector<8x8xf32>
    %cst_43 = arith.constant dense<0xFF800000> : vector<8xf32>
    %80 = vector.multi_reduction <maximumf>, %79, %cst_43 [1] : vector<8x8xf32> to vector<8xf32>
    %81 = vector.shape_cast %80 : vector<8xf32> to vector<8x1xf32>
    %82 = vector.broadcast %81 : vector<8x1xf32> to vector<8x8xf32>
    %83 = arith.subf %79, %82 : vector<8x8xf32>
    %84 = math.exp %83 : vector<8x8xf32>
    %cst_44 = arith.constant dense<0.000000e+00> : vector<8xf32>
    %85 = vector.multi_reduction <add>, %84, %cst_44 [1] : vector<8x8xf32> to vector<8xf32>
    %86 = vector.shape_cast %85 : vector<8xf32> to vector<8x1xf32>
    %87 = vector.broadcast %86 : vector<8x1xf32> to vector<8x8xf32>
    %88 = arith.divf %84, %87 : vector<8x8xf32>
    %cst_45 = arith.constant dense<0.000000e+00> : vector<8x8xf32>
    %89 = tpu.matmul %88, %76, %cst_45 {dimension_numbers = #tpu.dot_dimension_numbers<[1], [0], [0], [1], [0, 0, 1, 1], [], []>} : vector<8x8xf32>, vector<8x8xf32>, vector<8x8xf32> -> vector<8x8xf32>
    %c0_46 = arith.constant 0 : index
    %c0_47 = arith.constant 0 : index
    %c24 = arith.constant 24 : index
    %90 = vector.load %arg10[%c0_46, %c0_47, %c24] : memref<1x8x32xf32, #tpu.memory_space<vmem>>, vector<1x8x8xf32>
    %91 = vector.shape_cast %90 : vector<1x8x8xf32> to vector<8x8xf32>
    %92 = vector.shape_cast %89 : vector<8x8xf32> to vector<1x8x8xf32>
    tpu.vector_store %arg10[%c0_46, %c0_47, %c24], %92 {strides = array<i32>} : memref<1x8x32xf32, #tpu.memory_space<vmem>>, vector<1x8x8xf32>,
    %c0_48 = arith.constant 0 : index
    %c0_49 = arith.constant 0 : index
    %c0_50 = arith.constant 0 : index
    %93 = vector.load %arg10[%c0_48, %c0_49, %c0_50] : memref<1x8x32xf32, #tpu.memory_space<vmem>>, vector<1x8x32xf32>
    %94 = vector.shape_cast %93 : vector<1x8x32xf32> to vector<8x32xf32>
    %c0_51 = arith.constant 0 : index
    %c0_52 = arith.constant 0 : index
    %95 = vector.load %arg8[%c0_51, %c0_52] : memref<32x32xf32, #tpu.memory_space<vmem>>, vector<32x32xf32>
    %cst_53 = arith.constant dense<0.000000e+00> : vector<8x32xf32>
    %96 = tpu.matmul %94, %95, %cst_53 {dimension_numbers = #tpu.dot_dimension_numbers<[1], [0], [0], [1], [0, 0, 1, 1], [], []>} : vector<8x32xf32>, vector<32x32xf32>, vector<8x32xf32> -> vector<8x32xf32>
    %97 = vector.shape_cast %96 : vector<8x32xf32> to vector<1x8x32xf32>
    %c0_54 = arith.constant 0 : index
    %c0_55 = arith.constant 0 : index
    %c0_56 = arith.constant 0 : index
    %98 = vector.load %arg9[%c0_54, %c0_55, %c0_56] : memref<1x8x32xf32, #tpu.memory_space<vmem>>, vector<1x8x32xf32>
    tpu.vector_store %arg9[%c0_54, %c0_55, %c0_56], %97 {strides = array<i32>} : memref<1x8x32xf32, #tpu.memory_space<vmem>>, vector<1x8x32xf32>,
    return
  }
  func.func @transform_0(%arg0: i32) -> (i32, i32, i32) {
    %c0_i32 = arith.constant 0 : i32
    %c0_i32_0 = arith.constant 0 : i32
    %c0_i32_1 = arith.constant 0 : i32
    return %arg0, %c0_i32, %c0_i32_0 : i32, i32, i32
  }
  func.func @transform_1(%arg0: i32) -> (i32, i32, i32) {
    %c0_i32 = arith.constant 0 : i32
    %c0_i32_0 = arith.constant 0 : i32
    %c0_i32_1 = arith.constant 0 : i32
    return %arg0, %c0_i32, %c0_i32_0 : i32, i32, i32
  }
  func.func @transform_2(%arg0: i32) -> (i32, i32, i32) {
    %c0_i32 = arith.constant 0 : i32
    %c0_i32_0 = arith.constant 0 : i32
    %c0_i32_1 = arith.constant 0 : i32
    return %arg0, %c0_i32, %c0_i32_0 : i32, i32, i32
  }
  func.func @transform_3(%arg0: i32) -> (i32, i32, i32) {
    %c0_i32 = arith.constant 0 : i32
    %c0_i32_0 = arith.constant 0 : i32
    %c0_i32_1 = arith.constant 0 : i32
    return %arg0, %c0_i32, %c0_i32_0 : i32, i32, i32
  }
  func.func @transform_4(%arg0: i32) -> (i32, i32) {
    %c0_i32 = arith.constant 0 : i32
    %c0_i32_0 = arith.constant 0 : i32
    %c0_i32_1 = arith.constant 0 : i32
    return %c0_i32, %c0_i32_0 : i32, i32
  }
  func.func @transform_5(%arg0: i32) -> (i32, i32) {
    %c0_i32 = arith.constant 0 : i32
    %c0_i32_0 = arith.constant 0 : i32
    %c0_i32_1 = arith.constant 0 : i32
    return %c0_i32, %c0_i32_0 : i32, i32
  }
  func.func @transform_6(%arg0: i32) -> (i32, i32) {
    %c0_i32 = arith.constant 0 : i32
    %c0_i32_0 = arith.constant 0 : i32
    %c0_i32_1 = arith.constant 0 : i32
    return %c0_i32, %c0_i32_0 : i32, i32
  }
  func.func @transform_7(%arg0: i32) -> (i32, i32) {
    %c0_i32 = arith.constant 0 : i32
    %c0_i32_0 = arith.constant 0 : i32
    %c0_i32_1 = arith.constant 0 : i32
    return %c0_i32, %c0_i32_0 : i32, i32
  }
  func.func @transform_8(%arg0: i32) -> (i32, i32, i32) {
    %c0_i32 = arith.constant 0 : i32
    %c0_i32_0 = arith.constant 0 : i32
    %c0_i32_1 = arith.constant 0 : i32
    return %arg0, %c0_i32, %c0_i32_0 : i32, i32, i32
  }
}

</mosaic_0001>

<llo_original>
// kernel: tpu_custom_call.1
$region0: #{tpu_custom_call.1}
  #allocation0 [shape = 'u32[]', space=smem, size = 0x4, offset = 0x4, fixed_abs, tag = 'smem constant byte address 0x4 - core index']
  #allocation1 [shape = 'u32[144,128]{1,0:T(1,128)}', space=vmem, size = 0x12000, scoped, tag = 'internal scratch']
  #allocation2 [shape = 'f32[1,8,32]{2,1,0:T(8,128)}', space=vmem, size = 0x1000, scoped, tag = 'scratch operand']
  %s0 = inlined_call_operand.hbm [shape: f32[2,8,16], index: 0, kind: input, shape index: {}]
  %s1 = inlined_call_operand.hbm [shape: f32[2,8,16], index: 1, kind: input, shape index: {}]
  %s2 = inlined_call_operand.hbm [shape: f32[2,8,16], index: 2, kind: input, shape index: {}]
  %s3 = inlined_call_operand.vmem [shape: s32[2,8,1], index: 3, kind: input, shape index: {}]
  %s4 = inlined_call_operand.hbm [shape: f32[16,32], index: 4, kind: input, shape index: {}]
  %s5 = inlined_call_operand.hbm [shape: f32[16,32], index: 5, kind: input, shape index: {}]
  %s6 = inlined_call_operand.hbm [shape: f32[16,32], index: 6, kind: input, shape index: {}]
  %s7 = inlined_call_operand.vmem [shape: f32[32,32], index: 7, kind: input, shape index: {}]
  %s8 = inlined_call_operand.hbm [shape: f32[2,8,32], index: 8, kind: output, shape index: {}]
  %s9 = sld [smem:[#allocation0]]
  $region89: #{tpu_custom_call.1} parent=0
    _
  %s11 = ssub.s32 1, %s9
  %s12 = scalar_select 0, %s11, %s9
  $region1: #{tpu_custom_call.1} parent=0
    #allocation3 [shape = 'u8[8192]{0}', space=vmem, size = 0x2000, scoped, tag = 'input window, operand 0']
    #allocation4 [shape = 's32[2]{0}', space=sflag, size = 0x8, scoped, tag = 'scoped memory for tpu_custom_call.1']
    #allocation5 [shape = 's32[2]{0}', space=sflag, size = 0x8, scoped, tag = 'scoped memory for tpu_custom_call.1']
    #allocation6 [shape = 'u8[8192]{0}', space=vmem, size = 0x2000, scoped, tag = 'input window, operand 1']
    #allocation7 [shape = 's32[2]{0}', space=sflag, size = 0x8, scoped, tag = 'scoped memory for tpu_custom_call.1']
    #allocation8 [shape = 'u8[8192]{0}', space=vmem, size = 0x2000, scoped, tag = 'input window, operand 2']
    #allocation9 [shape = 'u8[8192]{0}', space=vmem, size = 0x2000, scoped, tag = 'input window, operand 4, single buffered']
    #allocation10 [shape = 's32[1]{0}', space=sflag, size = 0x4, scoped, tag = 'scoped memory for tpu_custom_call.1']
    #allocation11 [shape = 'u8[8192]{0}', space=vmem, size = 0x2000, scoped, tag = 'input window, operand 5, single buffered']
    #allocation12 [shape = 'u8[8192]{0}', space=vmem, size = 0x2000, scoped, tag = 'input window, operand 6, single buffered']
    #allocation13 [shape = 's32[1]{0}', space=sflag, size = 0x4, scoped, tag = 'scoped memory for tpu_custom_call.1']
    #allocation14 [shape = 'u8[8192]{0}', space=vmem, size = 0x2000, scoped, tag = 'output window, operand 0']
    %13 = vsyncpa [#allocation4], 0
    %s14 = scalar_lea.sflag [#allocation4], 1
    %15 = vsyncpa %s14, 0
    %16 = vsyncpa [#allocation7], 0
    %s17 = scalar_lea.sflag [#allocation7], 1
    %18 = vsyncpa %s17, 0
    %19 = vsyncpa [#allocation10], 0
    %20 = vsyncpa [#allocation13], 0
    %21 = vsyncpa [#allocation5], 0
    %s22 = scalar_lea.sflag [#allocation5], 1
    %23 = vsyncpa %s22, 0
    loop: start=0, step=1, limit=4
    $region2: #{tpu_custom_call.1} parent=1 // loop_pre_header
      _
    $region3: #{tpu_custom_call.1} parent=1 // loop_header
      %s25 = sphi 0, %s29
      %p26 = scmp.ge.s32.totalorder %s25, 4
      %s35 = sphi 0, %s37
      %s38 = sphi 0, %s35
      %s39 = sphi 0, %s38
      %s55 = sphi 0, %s39
      %s61 = sphi 0, %s63
      %s64 = sphi 0, %s61
      %s65 = sphi 0, %s64
      %s81 = sphi 0, %s65
      %s87 = sphi 0, %s89
      %s90 = sphi 0, %s87
      %s91 = sphi 0, %s90
      %s107 = sphi 0, %s91
      %s113 = sphi 0, %s115
      %s116 = sphi 0, %s113
      %s117 = sphi 0, %s116
      %s133 = sphi 0, %s117
      %s137 = sphi 0, %s137
      %s139 = sphi 0, %s137
      %s140 = sphi 0, %s139
      %s154 = sphi 0, %s140
      %s158 = sphi 0, %s158
      %s160 = sphi 0, %s158
      %s161 = sphi 0, %s160
      %s175 = sphi 0, %s161
      %s179 = sphi 0, %s179
      %s181 = sphi 0, %s179
      %s182 = sphi 0, %s181
      %s196 = sphi 0, %s182
      %s200 = sphi 0, %s200
      %s202 = sphi 0, %s200
      %s203 = sphi 0, %s202
      %s217 = sphi 0, %s203
      %s223 = sphi 0, %s225
      %s226 = sphi 0, %s223
      %s227 = sphi 0, %s226
      %s243 = sphi 0, %s227
    $region4: #{tpu_custom_call.1} parent=1 // loop_header_branch
      %28 = sbr.rel (%p26) target = $region8
    $region5: #{tpu_custom_call.1} parent=1 // loop_body
      %s30 = ssub.s32 %s25, 1
      %s31 = ssub.s32 %s25, 2
      %s32 = sadd.s32 %s25, 1
      %s33 = ssub.s32 %s25, %s32
      %p34 = scmp.eq.s32.totalorder %s33, 0
      %s36 = sadd.s32 %s35, 1
      %s37 = scalar_select %p34, %s35, %s36
      %p40 = pneg %p34
      %p41 = scmp.eq.s32.totalorder %s25, 1
      %p42 = por %p40, %p41
      %p43 = scmp.ne.s32.totalorder %s35, %s38
      %p44 = scmp.eq.s32.totalorder %s25, 0
      %p45 = por %p43, %p44
      %p46 = scmp.ne.s32.totalorder %s35, %s38
      %p47 = scmp.eq.s32.totalorder %s30, 1
      %p48 = por %p46, %p47
      %p49 = scmp.ne.s32.totalorder %s38, %s39
      %p50 = scmp.eq.s32.totalorder %s30, 0
      %p51 = por %p49, %p50
      %p52 = scmp.ne.s32.totalorder %s38, %s39
      %p53 = scmp.eq.s32.totalorder %s31, 1
      %p54 = por %p52, %p53
      %p56 = scmp.ne.s32.totalorder %s39, %s55
      %p57 = scmp.eq.s32.totalorder %s31, 0
      %p58 = por %p56, %p57
      %s59 = ssub.s32 %s25, %s32
      %p60 = scmp.eq.s32.totalorder %s59, 0
      %s62 = sadd.s32 %s61, 1
      %s63 = scalar_select %p60, %s61, %s62
      %p66 = pneg %p60
      %p67 = scmp.eq.s32.totalorder %s25, 1
      %p68 = por %p66, %p67
      %p69 = scmp.ne.s32.totalorder %s61, %s64
      %p70 = scmp.eq.s32.totalorder %s25, 0
      %p71 = por %p69, %p70
      %p72 = scmp.ne.s32.totalorder %s61, %s64
      %p73 = scmp.eq.s32.totalorder %s30, 1
      %p74 = por %p72, %p73
      %p75 = scmp.ne.s32.totalorder %s64, %s65
      %p76 = scmp.eq.s32.totalorder %s30, 0
      %p77 = por %p75, %p76
      %p78 = scmp.ne.s32.totalorder %s64, %s65
      %p79 = scmp.eq.s32.totalorder %s31, 1
      %p80 = por %p78, %p79
      %p82 = scmp.ne.s32.totalorder %s65, %s81
      %p83 = scmp.eq.s32.totalorder %s31, 0
      %p84 = por %p82, %p83
      %s85 = ssub.s32 %s25, %s32
      %p86 = scmp.eq.s32.totalorder %s85, 0
      %s88 = sadd.s32 %s87, 1
      %s89 = scalar_select %p86, %s87, %s88
      %p92 = pneg %p86
      %p93 = scmp.eq.s32.totalorder %s25, 1
      %p94 = por %p92, %p93
      %p95 = scmp.ne.s32.totalorder %s87, %s90
      %p96 = scmp.eq.s32.totalorder %s25, 0
      %p97 = por %p95, %p96
      %p98 = scmp.ne.s32.totalorder %s87, %s90
      %p99 = scmp.eq.s32.totalorder %s30, 1
      %p100 = por %p98, %p99
      %p101 = scmp.ne.s32.totalorder %s90, %s91
      %p102 = scmp.eq.s32.totalorder %s30, 0
      %p103 = por %p101, %p102
      %p104 = scmp.ne.s32.totalorder %s90, %s91
      %p105 = scmp.eq.s32.totalorder %s31, 1
      %p106 = por %p104, %p105
      %p108 = scmp.ne.s32.totalorder %s91, %s107
      %p109 = scmp.eq.s32.totalorder %s31, 0
      %p110 = por %p108, %p109
      %s111 = ssub.s32 %s25, %s32
      %p112 = scmp.eq.s32.totalorder %s111, 0
      %s114 = sadd.s32 %s113, 1
      %s115 = scalar_select %p112, %s113, %s114
      %p118 = pneg %p112
      %p119 = scmp.eq.s32.totalorder %s25, 1
      %p120 = por %p118, %p119
      %p121 = scmp.ne.s32.totalorder %s113, %s116
      %p122 = scmp.eq.s32.totalorder %s25, 0
      %p123 = por %p121, %p122
      %p124 = scmp.ne.s32.totalorder %s113, %s116
      %p125 = scmp.eq.s32.totalorder %s30, 1
      %p126 = por %p124, %p125
      %p127 = scmp.ne.s32.totalorder %s116, %s117
      %p128 = scmp.eq.s32.totalorder %s30, 0
      %p129 = por %p127, %p128
      %p130 = scmp.ne.s32.totalorder %s116, %s117
      %p131 = scmp.eq.s32.totalorder %s31, 1
      %p132 = por %p130, %p131
      %p134 = scmp.ne.s32.totalorder %s117, %s133
      %p135 = scmp.eq.s32.totalorder %s31, 0
      %p136 = por %p134, %p135
      %s138 = sadd.s32 %s137, 1
      %p141 = scmp.eq.s32.totalorder %s25, 1
      %p142 = scmp.ne.s32.totalorder %s137, %s139
      %p143 = scmp.eq.s32.totalorder %s25, 0
      %p144 = por %p142, %p143
      %p145 = scmp.ne.s32.totalorder %s137, %s139
      %p146 = scmp.eq.s32.totalorder %s30, 1
      %p147 = por %p145, %p146
      %p148 = scmp.ne.s32.totalorder %s139, %s140
      %p149 = scmp.eq.s32.totalorder %s30, 0
      %p150 = por %p148, %p149
      %p151 = scmp.ne.s32.totalorder %s139, %s140
      %p152 = scmp.eq.s32.totalorder %s31, 1
      %p153 = por %p151, %p152
      %p155 = scmp.ne.s32.totalorder %s140, %s154
      %p156 = scmp.eq.s32.totalorder %s31, 0
      %p157 = por %p155, %p156
      %s159 = sadd.s32 %s158, 1
      %p162 = scmp.eq.s32.totalorder %s25, 1
      %p163 = scmp.ne.s32.totalorder %s158, %s160
      %p164 = scmp.eq.s32.totalorder %s25, 0
      %p165 = por %p163, %p164
      %p166 = scmp.ne.s32.totalorder %s158, %s160
      %p167 = scmp.eq.s32.totalorder %s30, 1
      %p168 = por %p166, %p167
      %p169 = scmp.ne.s32.totalorder %s160, %s161
      %p170 = scmp.eq.s32.totalorder %s30, 0
      %p171 = por %p169, %p170
      %p172 = scmp.ne.s32.totalorder %s160, %s161
      %p173 = scmp.eq.s32.totalorder %s31, 1
      %p174 = por %p172, %p173
      %p176 = scmp.ne.s32.totalorder %s161, %s175
      %p177 = scmp.eq.s32.totalorder %s31, 0
      %p178 = por %p176, %p177
      %s180 = sadd.s32 %s179, 1
      %p183 = scmp.eq.s32.totalorder %s25, 1
      %p184 = scmp.ne.s32.totalorder %s179, %s181
      %p185 = scmp.eq.s32.totalorder %s25, 0
      %p186 = por %p184, %p185
      %p187 = scmp.ne.s32.totalorder %s179, %s181
      %p188 = scmp.eq.s32.totalorder %s30, 1
      %p189 = por %p187, %p188
      %p190 = scmp.ne.s32.totalorder %s181, %s182
      %p191 = scmp.eq.s32.totalorder %s30, 0
      %p192 = por %p190, %p191
      %p193 = scmp.ne.s32.totalorder %s181, %s182
      %p194 = scmp.eq.s32.totalorder %s31, 1
      %p195 = por %p193, %p194
      %p197 = scmp.ne.s32.totalorder %s182, %s196
      %p198 = scmp.eq.s32.totalorder %s31, 0
      %p199 = por %p197, %p198
      %s201 = sadd.s32 %s200, 1
      %p204 = scmp.eq.s32.totalorder %s25, 1
      %p205 = scmp.ne.s32.totalorder %s200, %s202
      %p206 = scmp.eq.s32.totalorder %s25, 0
      %p207 = por %p205, %p206
      %p208 = scmp.ne.s32.totalorder %s200, %s202
      %p209 = scmp.eq.s32.totalorder %s30, 1
      %p210 = por %p208, %p209
      %p211 = scmp.ne.s32.totalorder %s202, %s203
      %p212 = scmp.eq.s32.totalorder %s30, 0
      %p213 = por %p211, %p212
      %p214 = scmp.ne.s32.totalorder %s202, %s203
      %p215 = scmp.eq.s32.totalorder %s31, 1
      %p216 = por %p214, %p215
      %p218 = scmp.ne.s32.totalorder %s203, %s217
      %p219 = scmp.eq.s32.totalorder %s31, 0
      %p220 = por %p218, %p219
      %s221 = ssub.s32 %s25, %s32
      %p222 = scmp.eq.s32.totalorder %s221, 0
      %s224 = sadd.s32 %s223, 1
      %s225 = scalar_select %p222, %s223, %s224
      %p228 = pneg %p222
      %p229 = scmp.eq.s32.totalorder %s25, 1
      %p230 = por %p228, %p229
      %p231 = scmp.ne.s32.totalorder %s223, %s226
      %p232 = scmp.eq.s32.totalorder %s25, 0
      %p233 = por %p231, %p232
      %p234 = scmp.ne.s32.totalorder %s223, %s226
      %p235 = scmp.eq.s32.totalorder %s30, 1
      %p236 = por %p234, %p235
      %p237 = scmp.ne.s32.totalorder %s226, %s227
      %p238 = scmp.eq.s32.totalorder %s30, 0
      %p239 = por %p237, %p238
      %p240 = scmp.ne.s32.totalorder %s226, %s227
      %p241 = scmp.eq.s32.totalorder %s31, 1
      %p242 = por %p240, %p241
      %p244 = scmp.ne.s32.totalorder %s227, %s243
      %p245 = scmp.eq.s32.totalorder %s31, 0
      %p246 = por %p244, %p245
      %p247 = scmp.le.s32.totalorder 1, %s25
      %p248 = scmp.lt.s32.totalorder %s25, 3
      %p249 = pnand %p247, %p248
      %p250 = pneg %p249
      // Predicated region
      $region9: #{tpu_custom_call.1} parent=5 // pred_check
        _
      $region10: #{tpu_custom_call.1} parent=5 // pred_check_branch
        %252 = sbr.rel (%p249) target = $region12
      $region11: #{tpu_custom_call.1} parent=5 // pred_region
        %s253 = ssub.s32 %s25, 1
        // Predicated region
        $region13: #{tpu_custom_call.1} parent=11 // pred_check
          %p254 = pneg %p150
        $region14: #{tpu_custom_call.1} parent=11 // pred_check_branch
          %256 = sbr.rel (%p254) target = $region16
        $region15: #{tpu_custom_call.1} parent=11 // pred_region
          %s258 = ssub.s32 256, 256
          %259 = vsyncadd [#allocation10], %s258
          %s260 = sshll.u32 [#allocation9], 4
          %s261 = int_to_ptr.vmem [resolvable:$true] %s260
          %266 = dma.hbm_to_vmem [thread:$0]  %s4, 256, %s261, [#allocation10], 128, 128, 8
        $region16: #{tpu_custom_call.1} parent=11 // pred_fallthru
          _
        // Predicated region
        $region17: #{tpu_custom_call.1} parent=11 // pred_check
          %p267 = pneg %p171
        $region18: #{tpu_custom_call.1} parent=11 // pred_check_branch
          %269 = sbr.rel (%p267) target = $region20
        $region19: #{tpu_custom_call.1} parent=11 // pred_region
          %s271 = ssub.s32 256, 256
          %272 = vsyncadd [#allocation10], %s271
          %s273 = sshll.u32 [#allocation11], 4
          %s274 = int_to_ptr.vmem [resolvable:$true] %s273
          %279 = dma.hbm_to_vmem [thread:$0]  %s5, 256, %s274, [#allocation10], 128, 128, 8
        $region20: #{tpu_custom_call.1} parent=11 // pred_fallthru
          _
        // Predicated region
        $region21: #{tpu_custom_call.1} parent=11 // pred_check
          %p280 = pneg %p192
        $region22: #{tpu_custom_call.1} parent=11 // pred_check_branch
          %282 = sbr.rel (%p280) target = $region24
        $region23: #{tpu_custom_call.1} parent=11 // pred_region
          %s284 = ssub.s32 256, 256
          %285 = vsyncadd [#allocation13], %s284
          %s286 = sshll.u32 [#allocation12], 4
          %s287 = int_to_ptr.vmem [resolvable:$true] %s286
          %292 = dma.hbm_to_vmem [thread:$0]  %s6, 256, %s287, [#allocation13], 128, 128, 8
        $region24: #{tpu_custom_call.1} parent=11 // pred_fallthru
          _
        // Predicated region
        $region25: #{tpu_custom_call.1} parent=11 // pred_check
          %p293 = pneg %p213
        $region26: #{tpu_custom_call.1} parent=11 // pred_check_branch
          %295 = sbr.rel (%p293) target = $region28
        $region27: #{tpu_custom_call.1} parent=11 // pred_region
          _
        $region28: #{tpu_custom_call.1} parent=11 // pred_fallthru
          _
      $region12: #{tpu_custom_call.1} parent=5 // pred_fallthru
        _
      %p296 = scmp.lt.s32.totalorder %s25, 2
      // Predicated region
      $region29: #{tpu_custom_call.1} parent=5 // pred_check
        %p297 = pneg %p296
      $region30: #{tpu_custom_call.1} parent=5 // pred_check_branch
        %299 = sbr.rel (%p297) target = $region32
      $region31: #{tpu_custom_call.1} parent=5 // pred_region
        // Predicated region
        $region33: #{tpu_custom_call.1} parent=31 // pred_check
          %p300 = pneg %p45
        $region34: #{tpu_custom_call.1} parent=31 // pred_check_branch
          %302 = sbr.rel (%p300) target = $region36
        $region35: #{tpu_custom_call.1} parent=31 // pred_region
          %s303 = sand.u32 %s35, 1
          %s304 = scalar_lea.sflag [#allocation4], %s303
          %s305 = sand.u32 %s35, 1
          %s306 = smul.addr %s305, 8
          %s307 = scalar_lea.vmem [#allocation3], %s306
          %s309 = ssub.s32 128, 128
          %310 = vsyncadd %s304, %s309
          %s311 = smul.addr %s25, 128
          %s312 = scalar_lea.hbm %s0, %s311
          %s314 = sshll.u32 %s307, 4
          %s315 = int_to_ptr.vmem [resolvable:$true] %s314
          %317 = dma.hbm_to_vmem [thread:$0]  %s312, 128, %s315, %s304
        $region36: #{tpu_custom_call.1} parent=31 // pred_fallthru
          _
        // Predicated region
        $region37: #{tpu_custom_call.1} parent=31 // pred_check
          %p318 = pneg %p71
        $region38: #{tpu_custom_call.1} parent=31 // pred_check_branch
          %320 = sbr.rel (%p318) target = $region40
        $region39: #{tpu_custom_call.1} parent=31 // pred_region
          %s321 = sand.u32 %s25, 1
          %s322 = scalar_lea.sflag [#allocation7], %s321
          %s323 = sand.u32 %s61, 1
          %s324 = smul.addr %s323, 8
          %s325 = scalar_lea.vmem [#allocation6], %s324
          %s327 = ssub.s32 128, 128
          %328 = vsyncadd %s322, %s327
          %s329 = smul.addr %s25, 128
          %s330 = scalar_lea.hbm %s1, %s329
          %s332 = sshll.u32 %s325, 4
          %s333 = int_to_ptr.vmem [resolvable:$true] %s332
          %335 = dma.hbm_to_vmem [thread:$0]  %s330, 128, %s333, %s322
        $region40: #{tpu_custom_call.1} parent=31 // pred_fallthru
          _
        // Predicated region
        $region41: #{tpu_custom_call.1} parent=31 // pred_check
          %p336 = pneg %p97
        $region42: #{tpu_custom_call.1} parent=31 // pred_check_branch
          %338 = sbr.rel (%p336) target = $region44
        $region43: #{tpu_custom_call.1} parent=31 // pred_region
          %s339 = sand.u32 %s25, 1
          %s340 = scalar_lea.sflag [#allocation7], %s339
          %s341 = sand.u32 %s87, 1
          %s342 = smul.addr %s341, 8
          %s343 = scalar_lea.vmem [#allocation8], %s342
          %s345 = ssub.s32 128, 128
          %346 = vsyncadd %s340, %s345
          %s347 = smul.addr %s25, 128
          %s348 = scalar_lea.hbm %s2, %s347
          %s350 = sshll.u32 %s343, 4
          %s351 = int_to_ptr.vmem [resolvable:$true] %s350
          %353 = dma.hbm_to_vmem [thread:$0]  %s348, 128, %s351, %s340
        $region44: #{tpu_custom_call.1} parent=31 // pred_fallthru
          _
        // Predicated region
        $region45: #{tpu_custom_call.1} parent=31 // pred_check
          %p354 = pneg %p123
        $region46: #{tpu_custom_call.1} parent=31 // pred_check_branch
          %356 = sbr.rel (%p354) target = $region48
        $region47: #{tpu_custom_call.1} parent=31 // pred_region
          %p357 = scmp.lt.s32.totalorder %s25, 1
          %s358 = scalar_select %p357, %s25, 1
          %s359 = smul.addr %s358, 8
          %s360 = scalar_lea.vmem %s3, %s359
        $region48: #{tpu_custom_call.1} parent=31 // pred_fallthru
          _
      $region32: #{tpu_custom_call.1} parent=5 // pred_fallthru
        _
      %p361 = scmp.le.s32.totalorder 1, %s25
      %p362 = scmp.lt.s32.totalorder %s25, 3
      %p363 = pnand %p361, %p362
      %p364 = pneg %p363
      // Predicated region
      $region49: #{tpu_custom_call.1} parent=5 // pred_check
        _
      $region50: #{tpu_custom_call.1} parent=5 // pred_check_branch
        %366 = sbr.rel (%p363) target = $region52
      $region51: #{tpu_custom_call.1} parent=5 // pred_region
        %s367 = ssub.s32 %s25, 1
        %s368 = sand.u32 %s38, 1
        %s369 = scalar_lea.sflag [#allocation4], %s368
        %s370 = sand.u32 %s38, 1
        %s371 = smul.addr %s370, 8
        %s372 = scalar_lea.vmem [#allocation3], %s371
        // Predicated region
        $region53: #{tpu_custom_call.1} parent=51 // pred_check
          %p373 = pneg %p51
        $region54: #{tpu_custom_call.1} parent=51 // pred_check_branch
          %375 = sbr.rel (%p373) target = $region56
        $region55: #{tpu_custom_call.1} parent=51 // pred_region
          %376 = dma.done %s369, 128
        $region56: #{tpu_custom_call.1} parent=51 // pred_fallthru
          _
        %s377 = sand.u32 %s30, 1
        %s378 = scalar_lea.sflag [#allocation7], %s377
        %s379 = sand.u32 %s64, 1
        %s380 = smul.addr %s379, 8
        %s381 = scalar_lea.vmem [#allocation6], %s380
        // Predicated region
        $region57: #{tpu_custom_call.1} parent=51 // pred_check
          %p382 = pneg %p77
        $region58: #{tpu_custom_call.1} parent=51 // pred_check_branch
          %384 = sbr.rel (%p382) target = $region60
        $region59: #{tpu_custom_call.1} parent=51 // pred_region
          %385 = dma.done %s378, 128
        $region60: #{tpu_custom_call.1} parent=51 // pred_fallthru
          _
        %s386 = sand.u32 %s30, 1
        %s387 = scalar_lea.sflag [#allocation7], %s386
        %s388 = sand.u32 %s90, 1
        %s389 = smul.addr %s388, 8
        %s390 = scalar_lea.vmem [#allocation8], %s389
        // Predicated region
        $region61: #{tpu_custom_call.1} parent=51 // pred_check
          %p391 = pneg %p103
        $region62: #{tpu_custom_call.1} parent=51 // pred_check_branch
          %393 = sbr.rel (%p391) target = $region64
        $region63: #{tpu_custom_call.1} parent=51 // pred_region
          %394 = dma.done %s387, 128
        $region64: #{tpu_custom_call.1} parent=51 // pred_fallthru
          _
        // Predicated region
        $region65: #{tpu_custom_call.1} parent=51 // pred_check
          %p395 = pneg %p150
        $region66: #{tpu_custom_call.1} parent=51 // pred_check_branch
          %397 = sbr.rel (%p395) target = $region68
        $region67: #{tpu_custom_call.1} parent=51 // pred_region
          %398 = dma.done [#allocation10], 256
        $region68: #{tpu_custom_call.1} parent=51 // pred_fallthru
          _
        // Predicated region
        $region69: #{tpu_custom_call.1} parent=51 // pred_check
          %p399 = pneg %p171
        $region70: #{tpu_custom_call.1} parent=51 // pred_check_branch
          %401 = sbr.rel (%p399) target = $region72
        $region71: #{tpu_custom_call.1} parent=51 // pred_region
          %402 = dma.done [#allocation10], 256
        $region72: #{tpu_custom_call.1} parent=51 // pred_fallthru
          _
        // Predicated region
        $region73: #{tpu_custom_call.1} parent=51 // pred_check
          %p403 = pneg %p192
        $region74: #{tpu_custom_call.1} parent=51 // pred_check_branch
          %405 = sbr.rel (%p403) target = $region76
        $region75: #{tpu_custom_call.1} parent=51 // pred_region
          %406 = dma.done [#allocation13], 256
        $region76: #{tpu_custom_call.1} parent=51 // pred_fallthru
          _
        %s407 = sand.u32 %s38, 1
        %s408 = scalar_lea.sflag [#allocation4], %s407
        %s409 = sand.u32 %s38, 1
        %s410 = smul.addr %s409, 8
        %s411 = scalar_lea.vmem [#allocation3], %s410
        %p412 = pneg %p51
        %p413 = pneg %p48
        %s414 = sand.u32 %s30, 1
        %s415 = scalar_lea.sflag [#allocation7], %s414
        %s416 = sand.u32 %s64, 1
        %s417 = smul.addr %s416, 8
        %s418 = scalar_lea.vmem [#allocation6], %s417
        %p419 = pneg %p77
        %p420 = pneg %p74
        %s421 = sand.u32 %s30, 1
        %s422 = scalar_lea.sflag [#allocation7], %s421
        %s423 = sand.u32 %s90, 1
        %s424 = smul.addr %s423, 8
        %s425 = scalar_lea.vmem [#allocation8], %s424
        %p426 = pneg %p103
        %p427 = pneg %p100
        %p428 = scmp.lt.s32.totalorder %s30, 1
        %s429 = scalar_select %p428, %s30, 1
        %s430 = smul.addr %s429, 8
        %s431 = scalar_lea.vmem %s3, %s430
        %p432 = pneg %p129
        %p433 = pneg %p126
        %p434 = pneg %p150
        %p435 = pneg %p147
        %p436 = pneg %p171
        %p437 = pneg %p168
        %p438 = pneg %p192
        %p439 = pneg %p189
        %p440 = pneg %p213
        %p441 = pneg %p210
        %p442 = pneg %p239
        %p443 = pneg %p236
        %s444 = sand.u32 %s226, 1
        %s445 = scalar_lea.sflag [#allocation5], %s444
        %s446 = sand.u32 %s226, 1
        %s447 = smul.addr %s446, 8
        %s448 = scalar_lea.vmem [#allocation14], %s447
        %p449 = scmp.lt.s32.totalorder %s30, 1
        %s450 = scalar_select %p449, %s30, 1
        %s451 = smul.addr %s450, 8
        %s452 = scalar_lea.vmem %s3, %s451
        %v453 = vld [vmem:[%s372] sm:$0xff]
        %v454 = vld [vmem:[%s381] sm:$0xff]
        %v455 = vld [vmem:[%s390] sm:$0xff]
        %v456 = vld [vmem:[#allocation9] sm:$0xff]
        %v457 = vld [vmem:[#allocation9 + $0x8] sm:$0xff]
        %vm458 = vcmask 130048
        %v460 = vsel %vm458, %v453, 0
        %462 = vmatprep.subr.mxu0 0.0
        %463 = vmatpush1.msra.mxu0 %v456
        %464 = vmatprep.subr.mxu0 0.0
        %465 = vmatpush1.msra.mxu0 %v457
        %466 = vmatprep.subr.mxu0 0.0
        %467 = vmatpush1.msra.mxu0 0.0
        %468 = vmatprep.subr.mxu0 0.0
        %469 = vmatpush1.msra.mxu0 0.0
        %470 = vmatprep.subr.mxu0 0.0
        %471 = vmatpush1.msra.mxu0 0.0
        %472 = vmatprep.subr.mxu0 0.0
        %473 = vmatpush1.msra.mxu0 0.0
        %474 = vmatprep.subr.mxu0 0.0
        %475 = vmatpush1.msra.mxu0 0.0
        %476 = vmatprep.subr.mxu0 0.0
        %477 = vmatpush1.msra.mxu0 0.0
        %478 = vmatprep.subr.mxu0 0.0
        %479 = vmatpush1.msra.mxu0 0.0
        %480 = vmatprep.subr.mxu0 0.0
        %481 = vmatpush1.msra.mxu0 0.0
        %482 = vmatprep.subr.mxu0 0.0
        %483 = vmatpush1.msra.mxu0 0.0
        %484 = vmatprep.subr.mxu0 0.0
        %485 = vmatpush1.msra.mxu0 0.0
        %486 = vmatprep.subr.mxu0 0.0
        %487 = vmatpush1.msra.mxu0 0.0
        %488 = vmatprep.subr.mxu0 0.0
        %489 = vmatpush1.msra.mxu0 0.0
        %490 = vmatprep.subr.mxu0 0.0
        %491 = vmatpush1.msra.mxu0 0.0
        %492 = vmatprep.subr.mxu0 0.0
        %493 = vmatpush1.msra.mxu0 0.0
        %494 = vmatprep.subr.mxu0 0.0
        %495 = vmatpush1.msra.mxu0 0.0
        %496 = vmatprep.subr.mxu0 0.0
        %497 = vmatpush1.msra.mxu0 0.0
        %498 = vmatprep.subr.mxu0 0.0
        %499 = vmatpush1.msra.mxu0 0.0
        %500 = vmatprep.subr.mxu0 0.0
        %501 = vmatpush1.msra.mxu0 0.0
        %502 = vmatprep.subr.mxu0 0.0
        %503 = vmatpush1.msra.mxu0 0.0
        %504 = vmatprep.subr.mxu0 0.0
        %505 = vmatpush1.msra.mxu0 0.0
        %506 = vmatprep.subr.mxu0 0.0
        %507 = vmatpush1.msra.mxu0 0.0
        %508 = vmatprep.subr.mxu0 0.0
        %509 = vmatpush1.msra.mxu0 0.0
        %510 = vmatprep.subr.mxu0 0.0
        %511 = vmatpush1.msra.mxu0 0.0
        %512 = vmatprep.subr.mxu0 0.0
        %513 = vmatpush1.msra.mxu0 0.0
        %514 = vmatprep.subr.mxu0 0.0
        %515 = vmatpush1.msra.mxu0 0.0
        %516 = vmatprep.subr.mxu0 0.0
        %517 = vmatpush1.msra.mxu0 0.0
        %518 = vmatprep.subr.mxu0 0.0
        %519 = vmatpush1.msra.mxu0 0.0
        %520 = vmatprep.subr.mxu0 0.0
        %521 = vmatpush1.msra.mxu0 0.0
        %522 = vmatprep.subr.mxu0 0.0
        %523 = vmatpush1.msra.mxu0 0.0
        %524 = vmatprep.subr.mxu0 0.0
        %525 = vmatpush1.msra.mxu0 0.0
        %526 = vmatprep.mubr.f32.mxu0 0.0
        %527 = vmatmul.mubr.f32.gmra.mrb[0].mxu0 %v460
        %v528 = vpop.f32.mrb[0].mxu0
        %v529 = vadd.f32 0.0, %v528
        %v530 = vpop.f32.mrb[0].mxu0
        %531 = vdwg.mxu0
        %v532 = vld [vmem:[#allocation11] sm:$0xff]
        %v533 = vld [vmem:[#allocation11 + $0x8] sm:$0xff]
        %v535 = vsel %vm458, %v454, 0
        %537 = vmatprep.subr.mxu0 0.0
        %538 = vmatpush1.msra.mxu0 %v532
        %539 = vmatprep.subr.mxu0 0.0
        %540 = vmatpush1.msra.mxu0 %v533
        %541 = vmatprep.subr.mxu0 0.0
        %542 = vmatpush1.msra.mxu0 0.0
        %543 = vmatprep.subr.mxu0 0.0
        %544 = vmatpush1.msra.mxu0 0.0
        %545 = vmatprep.subr.mxu0 0.0
        %546 = vmatpush1.msra.mxu0 0.0
        %547 = vmatprep.subr.mxu0 0.0
        %548 = vmatpush1.msra.mxu0 0.0
        %549 = vmatprep.subr.mxu0 0.0
        %550 = vmatpush1.msra.mxu0 0.0
        %551 = vmatprep.subr.mxu0 0.0
        %552 = vmatpush1.msra.mxu0 0.0
        %553 = vmatprep.subr.mxu0 0.0
        %554 = vmatpush1.msra.mxu0 0.0
        %555 = vmatprep.subr.mxu0 0.0
        %556 = vmatpush1.msra.mxu0 0.0
        %557 = vmatprep.subr.mxu0 0.0
        %558 = vmatpush1.msra.mxu0 0.0
        %559 = vmatprep.subr.mxu0 0.0
        %560 = vmatpush1.msra.mxu0 0.0
        %561 = vmatprep.subr.mxu0 0.0
        %562 = vmatpush1.msra.mxu0 0.0
        %563 = vmatprep.subr.mxu0 0.0
        %564 = vmatpush1.msra.mxu0 0.0
        %565 = vmatprep.subr.mxu0 0.0
        %566 = vmatpush1.msra.mxu0 0.0
        %567 = vmatprep.subr.mxu0 0.0
        %568 = vmatpush1.msra.mxu0 0.0
        %569 = vmatprep.subr.mxu0 0.0
        %570 = vmatpush1.msra.mxu0 0.0
        %571 = vmatprep.subr.mxu0 0.0
        %572 = vmatpush1.msra.mxu0 0.0
        %573 = vmatprep.subr.mxu0 0.0
        %574 = vmatpush1.msra.mxu0 0.0
        %575 = vmatprep.subr.mxu0 0.0
        %576 = vmatpush1.msra.mxu0 0.0
        %577 = vmatprep.subr.mxu0 0.0
        %578 = vmatpush1.msra.mxu0 0.0
        %579 = vmatprep.subr.mxu0 0.0
        %580 = vmatpush1.msra.mxu0 0.0
        %581 = vmatprep.subr.mxu0 0.0
        %582 = vmatpush1.msra.mxu0 0.0
        %583 = vmatprep.subr.mxu0 0.0
        %584 = vmatpush1.msra.mxu0 0.0
        %585 = vmatprep.subr.mxu0 0.0
        %586 = vmatpush1.msra.mxu0 0.0
        %587 = vmatprep.subr.mxu0 0.0
        %588 = vmatpush1.msra.mxu0 0.0
        %589 = vmatprep.subr.mxu0 0.0
        %590 = vmatpush1.msra.mxu0 0.0
        %591 = vmatprep.subr.mxu0 0.0
        %592 = vmatpush1.msra.mxu0 0.0
        %593 = vmatprep.subr.mxu0 0.0
        %594 = vmatpush1.msra.mxu0 0.0
        %595 = vmatprep.subr.mxu0 0.0
        %596 = vmatpush1.msra.mxu0 0.0
        %597 = vmatprep.subr.mxu0 0.0
        %598 = vmatpush1.msra.mxu0 0.0
        %599 = vmatprep.subr.mxu0 0.0
        %600 = vmatpush1.msra.mxu0 0.0
        %601 = vmatprep.mubr.f32.mxu0 0.0
        %602 = vmatmul.mubr.f32.gmra.mrb[0].mxu0 %v535
        %v603 = vpop.f32.mrb[0].mxu0
        %v604 = vadd.f32 0.0, %v603
        %v605 = vpop.f32.mrb[0].mxu0
        %606 = vdwg.mxu0
        %v607 = vld [vmem:[#allocation12] sm:$0xff]
        %v608 = vld [vmem:[#allocation12 + $0x8] sm:$0xff]
        %v610 = vsel %vm458, %v455, 0
        %612 = vmatprep.subr.mxu0 0.0
        %613 = vmatpush1.msra.mxu0 %v607
        %614 = vmatprep.subr.mxu0 0.0
        %615 = vmatpush1.msra.mxu0 %v608
        %616 = vmatprep.subr.mxu0 0.0
        %617 = vmatpush1.msra.mxu0 0.0
        %618 = vmatprep.subr.mxu0 0.0
        %619 = vmatpush1.msra.mxu0 0.0
        %620 = vmatprep.subr.mxu0 0.0
        %621 = vmatpush1.msra.mxu0 0.0
        %622 = vmatprep.subr.mxu0 0.0
        %623 = vmatpush1.msra.mxu0 0.0
        %624 = vmatprep.subr.mxu0 0.0
        %625 = vmatpush1.msra.mxu0 0.0
        %626 = vmatprep.subr.mxu0 0.0
        %627 = vmatpush1.msra.mxu0 0.0
        %628 = vmatprep.subr.mxu0 0.0
        %629 = vmatpush1.msra.mxu0 0.0
        %630 = vmatprep.subr.mxu0 0.0
        %631 = vmatpush1.msra.mxu0 0.0
        %632 = vmatprep.subr.mxu0 0.0
        %633 = vmatpush1.msra.mxu0 0.0
        %634 = vmatprep.subr.mxu0 0.0
        %635 = vmatpush1.msra.mxu0 0.0
        %636 = vmatprep.subr.mxu0 0.0
        %637 = vmatpush1.msra.mxu0 0.0
        %638 = vmatprep.subr.mxu0 0.0
        %639 = vmatpush1.msra.mxu0 0.0
        %640 = vmatprep.subr.mxu0 0.0
        %641 = vmatpush1.msra.mxu0 0.0
        %642 = vmatprep.subr.mxu0 0.0
        %643 = vmatpush1.msra.mxu0 0.0
        %644 = vmatprep.subr.mxu0 0.0
        %645 = vmatpush1.msra.mxu0 0.0
        %646 = vmatprep.subr.mxu0 0.0
        %647 = vmatpush1.msra.mxu0 0.0
        %648 = vmatprep.subr.mxu0 0.0
        %649 = vmatpush1.msra.mxu0 0.0
        %650 = vmatprep.subr.mxu0 0.0
        %651 = vmatpush1.msra.mxu0 0.0
        %652 = vmatprep.subr.mxu0 0.0
        %653 = vmatpush1.msra.mxu0 0.0
        %654 = vmatprep.subr.mxu0 0.0
        %655 = vmatpush1.msra.mxu0 0.0
        %656 = vmatprep.subr.mxu0 0.0
        %657 = vmatpush1.msra.mxu0 0.0
        %658 = vmatprep.subr.mxu0 0.0
        %659 = vmatpush1.msra.mxu0 0.0
        %660 = vmatprep.subr.mxu0 0.0
        %661 = vmatpush1.msra.mxu0 0.0
        %662 = vmatprep.subr.mxu0 0.0
        %663 = vmatpush1.msra.mxu0 0.0
        %664 = vmatprep.subr.mxu0 0.0
        %665 = vmatpush1.msra.mxu0 0.0
        %666 = vmatprep.subr.mxu0 0.0
        %667 = vmatpush1.msra.mxu0 0.0
        %668 = vmatprep.subr.mxu0 0.0
        %669 = vmatpush1.msra.mxu0 0.0
        %670 = vmatprep.subr.mxu0 0.0
        %671 = vmatpush1.msra.mxu0 0.0
        %672 = vmatprep.subr.mxu0 0.0
        %673 = vmatpush1.msra.mxu0 0.0
        %674 = vmatprep.subr.mxu0 0.0
        %675 = vmatpush1.msra.mxu0 0.0
        %676 = vmatprep.mubr.f32.mxu0 0.0
        %677 = vmatmul.mubr.f32.gmra.mrb[0].mxu0 %v610
        %v678 = vpop.f32.mrb[0].mxu0
        %v679 = vadd.f32 0.0, %v678
        %v680 = vpop.f32.mrb[0].mxu0
        %681 = vdwg.mxu0
        %v682 = vlaneseq
        %v683 = vand.u32 %v682, 127
        %v684 = vld [vmem:[%s452] sm:$0xff]
        %685 = vset.pattern.permute.xlu0 0
        %686 = vperm.xlu0 %685, %v684
        %v687 = vpop.permute.xlu0 %686
        %vm688 = vcmp.lt.s32.totalorder %v683, %v687
        %vm689 = vcmask 64512
        %v691 = vsel %vm689, %v529, 0
        %v694 = vsel %vm689, %v604, 0
        %696 = vmatprep.subr.mxu0 0.0
        %697 = vmatpush1.xpose.msra.mxu0 %v694
        %698 = vmatprep.subr.mxu0 0.0
        %699 = vmatpush1.xpose.msra.mxu0 0.0
        %700 = vmatprep.subr.mxu0 0.0
        %701 = vmatpush1.xpose.msra.mxu0 0.0
        %702 = vmatprep.subr.mxu0 0.0
        %703 = vmatpush1.xpose.msra.mxu0 0.0
        %704 = vmatprep.subr.mxu0 0.0
        %705 = vmatpush1.xpose.msra.mxu0 0.0
        %706 = vmatprep.subr.mxu0 0.0
        %707 = vmatpush1.xpose.msra.mxu0 0.0
        %708 = vmatprep.subr.mxu0 0.0
        %709 = vmatpush1.xpose.msra.mxu0 0.0
        %710 = vmatprep.subr.mxu0 0.0
        %711 = vmatpush1.xpose.msra.mxu0 0.0
        %712 = vmatprep.subr.mxu0 0.0
        %713 = vmatpush1.xpose.msra.mxu0 0.0
        %714 = vmatprep.subr.mxu0 0.0
        %715 = vmatpush1.xpose.msra.mxu0 0.0
        %716 = vmatprep.subr.mxu0 0.0
        %717 = vmatpush1.xpose.msra.mxu0 0.0
        %718 = vmatprep.subr.mxu0 0.0
        %719 = vmatpush1.xpose.msra.mxu0 0.0
        %720 = vmatprep.subr.mxu0 0.0
        %721 = vmatpush1.xpose.msra.mxu0 0.0
        %722 = vmatprep.subr.mxu0 0.0
        %723 = vmatpush1.xpose.msra.mxu0 0.0
        %724 = vmatprep.subr.mxu0 0.0
        %725 = vmatpush1.xpose.msra.mxu0 0.0
        %726 = vmatprep.subr.mxu0 0.0
        %727 = vmatpush1.xpose.msra.mxu0 0.0
        %728 = vmatprep.subr.mxu0 0.0
        %729 = vmatpush1.xpose.msra.mxu0 0.0
        %730 = vmatprep.subr.mxu0 0.0
        %731 = vmatpush1.xpose.msra.mxu0 0.0
        %732 = vmatprep.subr.mxu0 0.0
        %733 = vmatpush1.xpose.msra.mxu0 0.0
        %734 = vmatprep.subr.mxu0 0.0
        %735 = vmatpush1.xpose.msra.mxu0 0.0
        %736 = vmatprep.subr.mxu0 0.0
        %737 = vmatpush1.xpose.msra.mxu0 0.0
        %738 = vmatprep.subr.mxu0 0.0
        %739 = vmatpush1.xpose.msra.mxu0 0.0
        %740 = vmatprep.subr.mxu0 0.0
        %741 = vmatpush1.xpose.msra.mxu0 0.0
        %742 = vmatprep.subr.mxu0 0.0
        %743 = vmatpush1.xpose.msra.mxu0 0.0
        %744 = vmatprep.subr.mxu0 0.0
        %745 = vmatpush1.xpose.msra.mxu0 0.0
        %746 = vmatprep.subr.mxu0 0.0
        %747 = vmatpush1.xpose.msra.mxu0 0.0
        %748 = vmatprep.subr.mxu0 0.0
        %749 = vmatpush1.xpose.msra.mxu0 0.0
        %750 = vmatprep.subr.mxu0 0.0
        %751 = vmatpush1.xpose.msra.mxu0 0.0
        %752 = vmatprep.subr.mxu0 0.0
        %753 = vmatpush1.xpose.msra.mxu0 0.0
        %754 = vmatprep.subr.mxu0 0.0
        %755 = vmatpush1.xpose.msra.mxu0 0.0
        %756 = vmatprep.subr.mxu0 0.0
        %757 = vmatpush1.xpose.msra.mxu0 0.0
        %758 = vmatprep.subr.mxu0 0.0
        %759 = vmatpush1.xpose.msra.mxu0 0.0
        %760 = vmatprep.mubr.f32.mxu0 0.0
        %761 = vmatmul.mubr.f32.gmra.mrb[0].mxu0 %v691
        %v762 = vpop.f32.mrb[0].mxu0
        %v763 = vadd.f32 0.0, %v762
        %v764 = vpop.f32.mrb[0].mxu0
        %765 = vdwg.mxu0
        %v766 = vsel %vm688, %v763, -1e+20
        %v767 = vsel %vm689, %v766, -inf
        %768 = vmax.xlane.f32.xlu0 %v767
        %v769 = vpop.xlane.xlu0 %768
        %v770 = vsub.f32 %v766, %v769
        %v771 = vmul.f32 %v770, 1.442695
        %v772 = vpow.pop %v771
        %v773 = vsel %vm689, %v772, 0.0
        %774 = vadd.xlane.f32.xlu0 %v773
        %v775 = vpop.xlane.xlu0 %774
        %v776 = vrcp.pop %v775
        %v777 = vmul.f32 %v772, %v776
        %v779 = vsel %vm689, %v777, 0
        %781 = vmatprep.subr.mxu0 0.0
        %782 = vmatpush1.msra.mxu0 %v679
        %783 = vmatprep.subr.mxu0 0.0
        %784 = vmatpush1.msra.mxu0 0.0
        %785 = vmatprep.subr.mxu0 0.0
        %786 = vmatpush1.msra.mxu0 0.0
        %787 = vmatprep.subr.mxu0 0.0
        %788 = vmatpush1.msra.mxu0 0.0
        %789 = vmatprep.subr.mxu0 0.0
        %790 = vmatpush1.msra.mxu0 0.0
        %791 = vmatprep.subr.mxu0 0.0
        %792 = vmatpush1.msra.mxu0 0.0
        %793 = vmatprep.subr.mxu0 0.0
        %794 = vmatpush1.msra.mxu0 0.0
        %795 = vmatprep.subr.mxu0 0.0
        %796 = vmatpush1.msra.mxu0 0.0
        %797 = vmatprep.subr.mxu0 0.0
        %798 = vmatpush1.msra.mxu0 0.0
        %799 = vmatprep.subr.mxu0 0.0
        %800 = vmatpush1.msra.mxu0 0.0
        %801 = vmatprep.subr.mxu0 0.0
        %802 = vmatpush1.msra.mxu0 0.0
        %803 = vmatprep.subr.mxu0 0.0
        %804 = vmatpush1.msra.mxu0 0.0
        %805 = vmatprep.subr.mxu0 0.0
        %806 = vmatpush1.msra.mxu0 0.0
        %807 = vmatprep.subr.mxu0 0.0
        %808 = vmatpush1.msra.mxu0 0.0
        %809 = vmatprep.subr.mxu0 0.0
        %810 = vmatpush1.msra.mxu0 0.0
        %811 = vmatprep.subr.mxu0 0.0
        %812 = vmatpush1.msra.mxu0 0.0
        %813 = vmatprep.subr.mxu0 0.0
        %814 = vmatpush1.msra.mxu0 0.0
        %815 = vmatprep.subr.mxu0 0.0
        %816 = vmatpush1.msra.mxu0 0.0
        %817 = vmatprep.subr.mxu0 0.0
        %818 = vmatpush1.msra.mxu0 0.0
        %819 = vmatprep.subr.mxu0 0.0
        %820 = vmatpush1.msra.mxu0 0.0
        %821 = vmatprep.subr.mxu0 0.0
        %822 = vmatpush1.msra.mxu0 0.0
        %823 = vmatprep.subr.mxu0 0.0
        %824 = vmatpush1.msra.mxu0 0.0
        %825 = vmatprep.subr.mxu0 0.0
        %826 = vmatpush1.msra.mxu0 0.0
        %827 = vmatprep.subr.mxu0 0.0
        %828 = vmatpush1.msra.mxu0 0.0
        %829 = vmatprep.subr.mxu0 0.0
        %830 = vmatpush1.msra.mxu0 0.0
        %831 = vmatprep.subr.mxu0 0.0
        %832 = vmatpush1.msra.mxu0 0.0
        %833 = vmatprep.subr.mxu0 0.0
        %834 = vmatpush1.msra.mxu0 0.0
        %835 = vmatprep.subr.mxu0 0.0
        %836 = vmatpush1.msra.mxu0 0.0
        %837 = vmatprep.subr.mxu0 0.0
        %838 = vmatpush1.msra.mxu0 0.0
        %839 = vmatprep.subr.mxu0 0.0
        %840 = vmatpush1.msra.mxu0 0.0
        %841 = vmatprep.subr.mxu0 0.0
        %842 = vmatpush1.msra.mxu0 0.0
        %843 = vmatprep.subr.mxu0 0.0
        %844 = vmatpush1.msra.mxu0 0.0
        %845 = vmatprep.mubr.f32.mxu0 0.0
        %846 = vmatmul.mubr.f32.gmra.mrb[0].mxu0 %v779
        %v847 = vpop.f32.mrb[0].mxu0
        %v848 = vadd.f32 0.0, %v847
        %v849 = vpop.f32.mrb[0].mxu0
        %850 = vdwg.mxu0
        %851 = vst.msk [vmem:[#allocation2] sm:$0xff] %vm689, %v848
        %852 = vrot.lane.b32.xlu0 %v529, 120
        %v853 = vpop.permute.xlu0 %852
        %854 = vrot.lane.b32.xlu0 %v604, 120
        %v855 = vpop.permute.xlu0 %854
        %v856 = vsel %vm689, %v853, 0
        %v858 = vsel %vm689, %v855, 0
        %860 = vmatprep.subr.mxu0 0.0
        %861 = vmatpush1.xpose.msra.mxu0 %v858
        %862 = vmatprep.subr.mxu0 0.0
        %863 = vmatpush1.xpose.msra.mxu0 0.0
        %864 = vmatprep.subr.mxu0 0.0
        %865 = vmatpush1.xpose.msra.mxu0 0.0
        %866 = vmatprep.subr.mxu0 0.0
        %867 = vmatpush1.xpose.msra.mxu0 0.0
        %868 = vmatprep.subr.mxu0 0.0
        %869 = vmatpush1.xpose.msra.mxu0 0.0
        %870 = vmatprep.subr.mxu0 0.0
        %871 = vmatpush1.xpose.msra.mxu0 0.0
        %872 = vmatprep.subr.mxu0 0.0
        %873 = vmatpush1.xpose.msra.mxu0 0.0
        %874 = vmatprep.subr.mxu0 0.0
        %875 = vmatpush1.xpose.msra.mxu0 0.0
        %876 = vmatprep.subr.mxu0 0.0
        %877 = vmatpush1.xpose.msra.mxu0 0.0
        %878 = vmatprep.subr.mxu0 0.0
        %879 = vmatpush1.xpose.msra.mxu0 0.0
        %880 = vmatprep.subr.mxu0 0.0
        %881 = vmatpush1.xpose.msra.mxu0 0.0
        %882 = vmatprep.subr.mxu0 0.0
        %883 = vmatpush1.xpose.msra.mxu0 0.0
        %884 = vmatprep.subr.mxu0 0.0
        %885 = vmatpush1.xpose.msra.mxu0 0.0
        %886 = vmatprep.subr.mxu0 0.0
        %887 = vmatpush1.xpose.msra.mxu0 0.0
        %888 = vmatprep.subr.mxu0 0.0
        %889 = vmatpush1.xpose.msra.mxu0 0.0
        %890 = vmatprep.subr.mxu0 0.0
        %891 = vmatpush1.xpose.msra.mxu0 0.0
        %892 = vmatprep.subr.mxu0 0.0
        %893 = vmatpush1.xpose.msra.mxu0 0.0
        %894 = vmatprep.subr.mxu0 0.0
        %895 = vmatpush1.xpose.msra.mxu0 0.0
        %896 = vmatprep.subr.mxu0 0.0
        %897 = vmatpush1.xpose.msra.mxu0 0.0
        %898 = vmatprep.subr.mxu0 0.0
        %899 = vmatpush1.xpose.msra.mxu0 0.0
        %900 = vmatprep.subr.mxu0 0.0
        %901 = vmatpush1.xpose.msra.mxu0 0.0
        %902 = vmatprep.subr.mxu0 0.0
        %903 = vmatpush1.xpose.msra.mxu0 0.0
        %904 = vmatprep.subr.mxu0 0.0
        %905 = vmatpush1.xpose.msra.mxu0 0.0
        %906 = vmatprep.subr.mxu0 0.0
        %907 = vmatpush1.xpose.msra.mxu0 0.0
        %908 = vmatprep.subr.mxu0 0.0
        %909 = vmatpush1.xpose.msra.mxu0 0.0
        %910 = vmatprep.subr.mxu0 0.0
        %911 = vmatpush1.xpose.msra.mxu0 0.0
        %912 = vmatprep.subr.mxu0 0.0
        %913 = vmatpush1.xpose.msra.mxu0 0.0
        %914 = vmatprep.subr.mxu0 0.0
        %915 = vmatpush1.xpose.msra.mxu0 0.0
        %916 = vmatprep.subr.mxu0 0.0
        %917 = vmatpush1.xpose.msra.mxu0 0.0
        %918 = vmatprep.subr.mxu0 0.0
        %919 = vmatpush1.xpose.msra.mxu0 0.0
        %920 = vmatprep.subr.mxu0 0.0
        %921 = vmatpush1.xpose.msra.mxu0 0.0
        %922 = vmatprep.subr.mxu0 0.0
        %923 = vmatpush1.xpose.msra.mxu0 0.0
        %924 = vmatprep.mubr.f32.mxu0 0.0
        %925 = vmatmul.mubr.f32.gmra.mrb[0].mxu0 %v856
        %v926 = vpop.f32.mrb[0].mxu0
        %v927 = vadd.f32 0.0, %v926
        %v928 = vpop.f32.mrb[0].mxu0
        %929 = vdwg.mxu0
        %v930 = vsel %vm688, %v927, -1e+20
        %v931 = vsel %vm689, %v930, -inf
        %932 = vmax.xlane.f32.xlu0 %v931
        %v933 = vpop.xlane.xlu0 %932
        %v934 = vsub.f32 %v930, %v933
        %v935 = vmul.f32 %v934, 1.442695
        %v936 = vpow.pop %v935
        %v937 = vsel %vm689, %v936, 0.0
        %938 = vadd.xlane.f32.xlu0 %v937
        %v939 = vpop.xlane.xlu0 %938
        %v940 = vrcp.pop %v939
        %v941 = vmul.f32 %v936, %v940
        %943 = vrot.lane.b32.xlu0 %v679, 120
        %v944 = vpop.permute.xlu0 %943
        %v947 = vsel %vm689, %v941, 0
        %949 = vmatprep.subr.mxu0 0.0
        %950 = vmatpush1.msra.mxu0 %v944
        %951 = vmatprep.subr.mxu0 0.0
        %952 = vmatpush1.msra.mxu0 0.0
        %953 = vmatprep.subr.mxu0 0.0
        %954 = vmatpush1.msra.mxu0 0.0
        %955 = vmatprep.subr.mxu0 0.0
        %956 = vmatpush1.msra.mxu0 0.0
        %957 = vmatprep.subr.mxu0 0.0
        %958 = vmatpush1.msra.mxu0 0.0
        %959 = vmatprep.subr.mxu0 0.0
        %960 = vmatpush1.msra.mxu0 0.0
        %961 = vmatprep.subr.mxu0 0.0
        %962 = vmatpush1.msra.mxu0 0.0
        %963 = vmatprep.subr.mxu0 0.0
        %964 = vmatpush1.msra.mxu0 0.0
        %965 = vmatprep.subr.mxu0 0.0
        %966 = vmatpush1.msra.mxu0 0.0
        %967 = vmatprep.subr.mxu0 0.0
        %968 = vmatpush1.msra.mxu0 0.0
        %969 = vmatprep.subr.mxu0 0.0
        %970 = vmatpush1.msra.mxu0 0.0
        %971 = vmatprep.subr.mxu0 0.0
        %972 = vmatpush1.msra.mxu0 0.0
        %973 = vmatprep.subr.mxu0 0.0
        %974 = vmatpush1.msra.mxu0 0.0
        %975 = vmatprep.subr.mxu0 0.0
        %976 = vmatpush1.msra.mxu0 0.0
        %977 = vmatprep.subr.mxu0 0.0
        %978 = vmatpush1.msra.mxu0 0.0
        %979 = vmatprep.subr.mxu0 0.0
        %980 = vmatpush1.msra.mxu0 0.0
        %981 = vmatprep.subr.mxu0 0.0
        %982 = vmatpush1.msra.mxu0 0.0
        %983 = vmatprep.subr.mxu0 0.0
        %984 = vmatpush1.msra.mxu0 0.0
        %985 = vmatprep.subr.mxu0 0.0
        %986 = vmatpush1.msra.mxu0 0.0
        %987 = vmatprep.subr.mxu0 0.0
        %988 = vmatpush1.msra.mxu0 0.0
        %989 = vmatprep.subr.mxu0 0.0
        %990 = vmatpush1.msra.mxu0 0.0
        %991 = vmatprep.subr.mxu0 0.0
        %992 = vmatpush1.msra.mxu0 0.0
        %993 = vmatprep.subr.mxu0 0.0
        %994 = vmatpush1.msra.mxu0 0.0
        %995 = vmatprep.subr.mxu0 0.0
        %996 = vmatpush1.msra.mxu0 0.0
        %997 = vmatprep.subr.mxu0 0.0
        %998 = vmatpush1.msra.mxu0 0.0
        %999 = vmatprep.subr.mxu0 0.0
        %1000 = vmatpush1.msra.mxu0 0.0
        %1001 = vmatprep.subr.mxu0 0.0
        %1002 = vmatpush1.msra.mxu0 0.0
        %1003 = vmatprep.subr.mxu0 0.0
        %1004 = vmatpush1.msra.mxu0 0.0
        %1005 = vmatprep.subr.mxu0 0.0
        %1006 = vmatpush1.msra.mxu0 0.0
        %1007 = vmatprep.subr.mxu0 0.0
        %1008 = vmatpush1.msra.mxu0 0.0
        %1009 = vmatprep.subr.mxu0 0.0
        %1010 = vmatpush1.msra.mxu0 0.0
        %1011 = vmatprep.subr.mxu0 0.0
        %1012 = vmatpush1.msra.mxu0 0.0
        %1013 = vmatprep.mubr.f32.mxu0 0.0
        %1014 = vmatmul.mubr.f32.gmra.mrb[0].mxu0 %v947
        %v1015 = vpop.f32.mrb[0].mxu0
        %v1016 = vadd.f32 0.0, %v1015
        %v1017 = vpop.f32.mrb[0].mxu0
        %1018 = vdwg.mxu0
        %1020 = vrot.lane.b32.xlu0 %v1016, 8
        %v1021 = vpop.permute.xlu0 %1020
        %vm1023 = vcmask 130112
        %1024 = vst.msk [vmem:[#allocation2] sm:$0xff] %vm1023, %v1021
        %1025 = vrot.lane.b32.xlu0 %v529, 112
        %v1026 = vpop.permute.xlu0 %1025
        %1027 = vrot.lane.b32.xlu0 %v604, 112
        %v1028 = vpop.permute.xlu0 %1027
        %v1029 = vsel %vm689, %v1026, 0
        %v1031 = vsel %vm689, %v1028, 0
        %1033 = vmatprep.subr.mxu0 0.0
        %1034 = vmatpush1.xpose.msra.mxu0 %v1031
        %1035 = vmatprep.subr.mxu0 0.0
        %1036 = vmatpush1.xpose.msra.mxu0 0.0
        %1037 = vmatprep.subr.mxu0 0.0
        %1038 = vmatpush1.xpose.msra.mxu0 0.0
        %1039 = vmatprep.subr.mxu0 0.0
        %1040 = vmatpush1.xpose.msra.mxu0 0.0
        %1041 = vmatprep.subr.mxu0 0.0
        %1042 = vmatpush1.xpose.msra.mxu0 0.0
        %1043 = vmatprep.subr.mxu0 0.0
        %1044 = vmatpush1.xpose.msra.mxu0 0.0
        %1045 = vmatprep.subr.mxu0 0.0
        %1046 = vmatpush1.xpose.msra.mxu0 0.0
        %1047 = vmatprep.subr.mxu0 0.0
        %1048 = vmatpush1.xpose.msra.mxu0 0.0
        %1049 = vmatprep.subr.mxu0 0.0
        %1050 = vmatpush1.xpose.msra.mxu0 0.0
        %1051 = vmatprep.subr.mxu0 0.0
        %1052 = vmatpush1.xpose.msra.mxu0 0.0
        %1053 = vmatprep.subr.mxu0 0.0
        %1054 = vmatpush1.xpose.msra.mxu0 0.0
        %1055 = vmatprep.subr.mxu0 0.0
        %1056 = vmatpush1.xpose.msra.mxu0 0.0
        %1057 = vmatprep.subr.mxu0 0.0
        %1058 = vmatpush1.xpose.msra.mxu0 0.0
        %1059 = vmatprep.subr.mxu0 0.0
        %1060 = vmatpush1.xpose.msra.mxu0 0.0
        %1061 = vmatprep.subr.mxu0 0.0
        %1062 = vmatpush1.xpose.msra.mxu0 0.0
        %1063 = vmatprep.subr.mxu0 0.0
        %1064 = vmatpush1.xpose.msra.mxu0 0.0
        %1065 = vmatprep.subr.mxu0 0.0
        %1066 = vmatpush1.xpose.msra.mxu0 0.0
        %1067 = vmatprep.subr.mxu0 0.0
        %1068 = vmatpush1.xpose.msra.mxu0 0.0
        %1069 = vmatprep.subr.mxu0 0.0
        %1070 = vmatpush1.xpose.msra.mxu0 0.0
        %1071 = vmatprep.subr.mxu0 0.0
        %1072 = vmatpush1.xpose.msra.mxu0 0.0
        %1073 = vmatprep.subr.mxu0 0.0
        %1074 = vmatpush1.xpose.msra.mxu0 0.0
        %1075 = vmatprep.subr.mxu0 0.0
        %1076 = vmatpush1.xpose.msra.mxu0 0.0
        %1077 = vmatprep.subr.mxu0 0.0
        %1078 = vmatpush1.xpose.msra.mxu0 0.0
        %1079 = vmatprep.subr.mxu0 0.0
        %1080 = vmatpush1.xpose.msra.mxu0 0.0
        %1081 = vmatprep.subr.mxu0 0.0
        %1082 = vmatpush1.xpose.msra.mxu0 0.0
        %1083 = vmatprep.subr.mxu0 0.0
        %1084 = vmatpush1.xpose.msra.mxu0 0.0
        %1085 = vmatprep.subr.mxu0 0.0
        %1086 = vmatpush1.xpose.msra.mxu0 0.0
        %1087 = vmatprep.subr.mxu0 0.0
        %1088 = vmatpush1.xpose.msra.mxu0 0.0
        %1089 = vmatprep.subr.mxu0 0.0
        %1090 = vmatpush1.xpose.msra.mxu0 0.0
        %1091 = vmatprep.subr.mxu0 0.0
        %1092 = vmatpush1.xpose.msra.mxu0 0.0
        %1093 = vmatprep.subr.mxu0 0.0
        %1094 = vmatpush1.xpose.msra.mxu0 0.0
        %1095 = vmatprep.subr.mxu0 0.0
        %1096 = vmatpush1.xpose.msra.mxu0 0.0
        %1097 = vmatprep.mubr.f32.mxu0 0.0
        %1098 = vmatmul.mubr.f32.gmra.mrb[0].mxu0 %v1029
        %v1099 = vpop.f32.mrb[0].mxu0
        %v1100 = vadd.f32 0.0, %v1099
        %v1101 = vpop.f32.mrb[0].mxu0
        %1102 = vdwg.mxu0
        %v1103 = vsel %vm688, %v1100, -1e+20
        %v1104 = vsel %vm689, %v1103, -inf
        %1105 = vmax.xlane.f32.xlu0 %v1104
        %v1106 = vpop.xlane.xlu0 %1105
        %v1107 = vsub.f32 %v1103, %v1106
        %v1108 = vmul.f32 %v1107, 1.442695
        %v1109 = vpow.pop %v1108
        %v1110 = vsel %vm689, %v1109, 0.0
        %1111 = vadd.xlane.f32.xlu0 %v1110
        %v1112 = vpop.xlane.xlu0 %1111
        %v1113 = vrcp.pop %v1112
        %v1114 = vmul.f32 %v1109, %v1113
        %1115 = vrot.lane.b32.xlu0 %v679, 112
        %v1116 = vpop.permute.xlu0 %1115
        %v1119 = vsel %vm689, %v1114, 0
        %1121 = vmatprep.subr.mxu0 0.0
        %1122 = vmatpush1.msra.mxu0 %v1116
        %1123 = vmatprep.subr.mxu0 0.0
        %1124 = vmatpush1.msra.mxu0 0.0
        %1125 = vmatprep.subr.mxu0 0.0
        %1126 = vmatpush1.msra.mxu0 0.0
        %1127 = vmatprep.subr.mxu0 0.0
        %1128 = vmatpush1.msra.mxu0 0.0
        %1129 = vmatprep.subr.mxu0 0.0
        %1130 = vmatpush1.msra.mxu0 0.0
        %1131 = vmatprep.subr.mxu0 0.0
        %1132 = vmatpush1.msra.mxu0 0.0
        %1133 = vmatprep.subr.mxu0 0.0
        %1134 = vmatpush1.msra.mxu0 0.0
        %1135 = vmatprep.subr.mxu0 0.0
        %1136 = vmatpush1.msra.mxu0 0.0
        %1137 = vmatprep.subr.mxu0 0.0
        %1138 = vmatpush1.msra.mxu0 0.0
        %1139 = vmatprep.subr.mxu0 0.0
        %1140 = vmatpush1.msra.mxu0 0.0
        %1141 = vmatprep.subr.mxu0 0.0
        %1142 = vmatpush1.msra.mxu0 0.0
        %1143 = vmatprep.subr.mxu0 0.0
        %1144 = vmatpush1.msra.mxu0 0.0
        %1145 = vmatprep.subr.mxu0 0.0
        %1146 = vmatpush1.msra.mxu0 0.0
        %1147 = vmatprep.subr.mxu0 0.0
        %1148 = vmatpush1.msra.mxu0 0.0
        %1149 = vmatprep.subr.mxu0 0.0
        %1150 = vmatpush1.msra.mxu0 0.0
        %1151 = vmatprep.subr.mxu0 0.0
        %1152 = vmatpush1.msra.mxu0 0.0
        %1153 = vmatprep.subr.mxu0 0.0
        %1154 = vmatpush1.msra.mxu0 0.0
        %1155 = vmatprep.subr.mxu0 0.0
        %1156 = vmatpush1.msra.mxu0 0.0
        %1157 = vmatprep.subr.mxu0 0.0
        %1158 = vmatpush1.msra.mxu0 0.0
        %1159 = vmatprep.subr.mxu0 0.0
        %1160 = vmatpush1.msra.mxu0 0.0
        %1161 = vmatprep.subr.mxu0 0.0
        %1162 = vmatpush1.msra.mxu0 0.0
        %1163 = vmatprep.subr.mxu0 0.0
        %1164 = vmatpush1.msra.mxu0 0.0
        %1165 = vmatprep.subr.mxu0 0.0
        %1166 = vmatpush1.msra.mxu0 0.0
        %1167 = vmatprep.subr.mxu0 0.0
        %1168 = vmatpush1.msra.mxu0 0.0
        %1169 = vmatprep.subr.mxu0 0.0
        %1170 = vmatpush1.msra.mxu0 0.0
        %1171 = vmatprep.subr.mxu0 0.0
        %1172 = vmatpush1.msra.mxu0 0.0
        %1173 = vmatprep.subr.mxu0 0.0
        %1174 = vmatpush1.msra.mxu0 0.0
        %1175 = vmatprep.subr.mxu0 0.0
        %1176 = vmatpush1.msra.mxu0 0.0
        %1177 = vmatprep.subr.mxu0 0.0
        %1178 = vmatpush1.msra.mxu0 0.0
        %1179 = vmatprep.subr.mxu0 0.0
        %1180 = vmatpush1.msra.mxu0 0.0
        %1181 = vmatprep.subr.mxu0 0.0
        %1182 = vmatpush1.msra.mxu0 0.0
        %1183 = vmatprep.subr.mxu0 0.0
        %1184 = vmatpush1.msra.mxu0 0.0
        %1185 = vmatprep.mubr.f32.mxu0 0.0
        %1186 = vmatmul.mubr.f32.gmra.mrb[0].mxu0 %v1119
        %v1187 = vpop.f32.mrb[0].mxu0
        %v1188 = vadd.f32 0.0, %v1187
        %v1189 = vpop.f32.mrb[0].mxu0
        %1190 = vdwg.mxu0
        %1192 = vrot.lane.b32.xlu0 %v1188, 16
        %v1193 = vpop.permute.xlu0 %1192
        %vm1195 = vcmask 195712
        %1196 = vst.msk [vmem:[#allocation2] sm:$0xff] %vm1195, %v1193
        %1197 = vrot.lane.b32.xlu0 %v529, 104
        %v1198 = vpop.permute.xlu0 %1197
        %1199 = vrot.lane.b32.xlu0 %v604, 104
        %v1200 = vpop.permute.xlu0 %1199
        %v1201 = vsel %vm689, %v1198, 0
        %v1203 = vsel %vm689, %v1200, 0
        %1205 = vmatprep.subr.mxu0 0.0
        %1206 = vmatpush1.xpose.msra.mxu0 %v1203
        %1207 = vmatprep.subr.mxu0 0.0
        %1208 = vmatpush1.xpose.msra.mxu0 0.0
        %1209 = vmatprep.subr.mxu0 0.0
        %1210 = vmatpush1.xpose.msra.mxu0 0.0
        %1211 = vmatprep.subr.mxu0 0.0
        %1212 = vmatpush1.xpose.msra.mxu0 0.0
        %1213 = vmatprep.subr.mxu0 0.0
        %1214 = vmatpush1.xpose.msra.mxu0 0.0
        %1215 = vmatprep.subr.mxu0 0.0
        %1216 = vmatpush1.xpose.msra.mxu0 0.0
        %1217 = vmatprep.subr.mxu0 0.0
        %1218 = vmatpush1.xpose.msra.mxu0 0.0
        %1219 = vmatprep.subr.mxu0 0.0
        %1220 = vmatpush1.xpose.msra.mxu0 0.0
        %1221 = vmatprep.subr.mxu0 0.0
        %1222 = vmatpush1.xpose.msra.mxu0 0.0
        %1223 = vmatprep.subr.mxu0 0.0
        %1224 = vmatpush1.xpose.msra.mxu0 0.0
        %1225 = vmatprep.subr.mxu0 0.0
        %1226 = vmatpush1.xpose.msra.mxu0 0.0
        %1227 = vmatprep.subr.mxu0 0.0
        %1228 = vmatpush1.xpose.msra.mxu0 0.0
        %1229 = vmatprep.subr.mxu0 0.0
        %1230 = vmatpush1.xpose.msra.mxu0 0.0
        %1231 = vmatprep.subr.mxu0 0.0
        %1232 = vmatpush1.xpose.msra.mxu0 0.0
        %1233 = vmatprep.subr.mxu0 0.0
        %1234 = vmatpush1.xpose.msra.mxu0 0.0
        %1235 = vmatprep.subr.mxu0 0.0
        %1236 = vmatpush1.xpose.msra.mxu0 0.0
        %1237 = vmatprep.subr.mxu0 0.0
        %1238 = vmatpush1.xpose.msra.mxu0 0.0
        %1239 = vmatprep.subr.mxu0 0.0
        %1240 = vmatpush1.xpose.msra.mxu0 0.0
        %1241 = vmatprep.subr.mxu0 0.0
        %1242 = vmatpush1.xpose.msra.mxu0 0.0
        %1243 = vmatprep.subr.mxu0 0.0
        %1244 = vmatpush1.xpose.msra.mxu0 0.0
        %1245 = vmatprep.subr.mxu0 0.0
        %1246 = vmatpush1.xpose.msra.mxu0 0.0
        %1247 = vmatprep.subr.mxu0 0.0
        %1248 = vmatpush1.xpose.msra.mxu0 0.0
        %1249 = vmatprep.subr.mxu0 0.0
        %1250 = vmatpush1.xpose.msra.mxu0 0.0
        %1251 = vmatprep.subr.mxu0 0.0
        %1252 = vmatpush1.xpose.msra.mxu0 0.0
        %1253 = vmatprep.subr.mxu0 0.0
        %1254 = vmatpush1.xpose.msra.mxu0 0.0
        %1255 = vmatprep.subr.mxu0 0.0
        %1256 = vmatpush1.xpose.msra.mxu0 0.0
        %1257 = vmatprep.subr.mxu0 0.0
        %1258 = vmatpush1.xpose.msra.mxu0 0.0
        %1259 = vmatprep.subr.mxu0 0.0
        %1260 = vmatpush1.xpose.msra.mxu0 0.0
        %1261 = vmatprep.subr.mxu0 0.0
        %1262 = vmatpush1.xpose.msra.mxu0 0.0
        %1263 = vmatprep.subr.mxu0 0.0
        %1264 = vmatpush1.xpose.msra.mxu0 0.0
        %1265 = vmatprep.subr.mxu0 0.0
        %1266 = vmatpush1.xpose.msra.mxu0 0.0
        %1267 = vmatprep.subr.mxu0 0.0
        %1268 = vmatpush1.xpose.msra.mxu0 0.0
        %1269 = vmatprep.mubr.f32.mxu0 0.0
        %1270 = vmatmul.mubr.f32.gmra.mrb[0].mxu0 %v1201
        %v1271 = vpop.f32.mrb[0].mxu0
        %v1272 = vadd.f32 0.0, %v1271
        %v1273 = vpop.f32.mrb[0].mxu0
        %1274 = vdwg.mxu0
        %v1275 = vsel %vm688, %v1272, -1e+20
        %v1276 = vsel %vm689, %v1275, -inf
        %1277 = vmax.xlane.f32.xlu0 %v1276
        %v1278 = vpop.xlane.xlu0 %1277
        %v1279 = vsub.f32 %v1275, %v1278
        %v1280 = vmul.f32 %v1279, 1.442695
        %v1281 = vpow.pop %v1280
        %v1282 = vsel %vm689, %v1281, 0.0
        %1283 = vadd.xlane.f32.xlu0 %v1282
        %v1284 = vpop.xlane.xlu0 %1283
        %v1285 = vrcp.pop %v1284
        %v1286 = vmul.f32 %v1281, %v1285
        %1287 = vrot.lane.b32.xlu0 %v679, 104
        %v1288 = vpop.permute.xlu0 %1287
        %v1291 = vsel %vm689, %v1286, 0
        %1293 = vmatprep.subr.mxu0 0.0
        %1294 = vmatpush1.msra.mxu0 %v1288
        %1295 = vmatprep.subr.mxu0 0.0
        %1296 = vmatpush1.msra.mxu0 0.0
        %1297 = vmatprep.subr.mxu0 0.0
        %1298 = vmatpush1.msra.mxu0 0.0
        %1299 = vmatprep.subr.mxu0 0.0
        %1300 = vmatpush1.msra.mxu0 0.0
        %1301 = vmatprep.subr.mxu0 0.0
        %1302 = vmatpush1.msra.mxu0 0.0
        %1303 = vmatprep.subr.mxu0 0.0
        %1304 = vmatpush1.msra.mxu0 0.0
        %1305 = vmatprep.subr.mxu0 0.0
        %1306 = vmatpush1.msra.mxu0 0.0
        %1307 = vmatprep.subr.mxu0 0.0
        %1308 = vmatpush1.msra.mxu0 0.0
        %1309 = vmatprep.subr.mxu0 0.0
        %1310 = vmatpush1.msra.mxu0 0.0
        %1311 = vmatprep.subr.mxu0 0.0
        %1312 = vmatpush1.msra.mxu0 0.0
        %1313 = vmatprep.subr.mxu0 0.0
        %1314 = vmatpush1.msra.mxu0 0.0
        %1315 = vmatprep.subr.mxu0 0.0
        %1316 = vmatpush1.msra.mxu0 0.0
        %1317 = vmatprep.subr.mxu0 0.0
        %1318 = vmatpush1.msra.mxu0 0.0
        %1319 = vmatprep.subr.mxu0 0.0
        %1320 = vmatpush1.msra.mxu0 0.0
        %1321 = vmatprep.subr.mxu0 0.0
        %1322 = vmatpush1.msra.mxu0 0.0
        %1323 = vmatprep.subr.mxu0 0.0
        %1324 = vmatpush1.msra.mxu0 0.0
        %1325 = vmatprep.subr.mxu0 0.0
        %1326 = vmatpush1.msra.mxu0 0.0
        %1327 = vmatprep.subr.mxu0 0.0
        %1328 = vmatpush1.msra.mxu0 0.0
        %1329 = vmatprep.subr.mxu0 0.0
        %1330 = vmatpush1.msra.mxu0 0.0
        %1331 = vmatprep.subr.mxu0 0.0
        %1332 = vmatpush1.msra.mxu0 0.0
        %1333 = vmatprep.subr.mxu0 0.0
        %1334 = vmatpush1.msra.mxu0 0.0
        %1335 = vmatprep.subr.mxu0 0.0
        %1336 = vmatpush1.msra.mxu0 0.0
        %1337 = vmatprep.subr.mxu0 0.0
        %1338 = vmatpush1.msra.mxu0 0.0
        %1339 = vmatprep.subr.mxu0 0.0
        %1340 = vmatpush1.msra.mxu0 0.0
        %1341 = vmatprep.subr.mxu0 0.0
        %1342 = vmatpush1.msra.mxu0 0.0
        %1343 = vmatprep.subr.mxu0 0.0
        %1344 = vmatpush1.msra.mxu0 0.0
        %1345 = vmatprep.subr.mxu0 0.0
        %1346 = vmatpush1.msra.mxu0 0.0
        %1347 = vmatprep.subr.mxu0 0.0
        %1348 = vmatpush1.msra.mxu0 0.0
        %1349 = vmatprep.subr.mxu0 0.0
        %1350 = vmatpush1.msra.mxu0 0.0
        %1351 = vmatprep.subr.mxu0 0.0
        %1352 = vmatpush1.msra.mxu0 0.0
        %1353 = vmatprep.subr.mxu0 0.0
        %1354 = vmatpush1.msra.mxu0 0.0
        %1355 = vmatprep.subr.mxu0 0.0
        %1356 = vmatpush1.msra.mxu0 0.0
        %1357 = vmatprep.mubr.f32.mxu0 0.0
        %1358 = vmatmul.mubr.f32.gmra.mrb[0].mxu0 %v1291
        %v1359 = vpop.f32.mrb[0].mxu0
        %v1360 = vadd.f32 0.0, %v1359
        %v1361 = vpop.f32.mrb[0].mxu0
        %1362 = vdwg.mxu0
        %1364 = vrot.lane.b32.xlu0 %v1360, 24
        %v1365 = vpop.permute.xlu0 %1364
        %vm1367 = vcmask 261312
        %1368 = vst.msk [vmem:[#allocation2] sm:$0xff] %vm1367, %v1365
        %v1369 = vld [vmem:[#allocation2] sm:$0xff]
        %v1370 = vld [vmem:[%s7] sm:$0xff]
        %v1371 = vld [vmem:[%s7 + $0x8] sm:$0xff]
        %v1372 = vld [vmem:[%s7 + $0x10] sm:$0xff]
        %v1373 = vld [vmem:[%s7 + $0x18] sm:$0xff]
        %vm1374 = vcmask 261120
        %v1376 = vsel %vm1374, %v1369, 0
        %1378 = vmatprep.subr.mxu0 0.0
        %1379 = vmatpush1.msra.mxu0 %v1370
        %1380 = vmatprep.subr.mxu0 0.0
        %1381 = vmatpush1.msra.mxu0 %v1371
        %1382 = vmatprep.subr.mxu0 0.0
        %1383 = vmatpush1.msra.mxu0 %v1372
        %1384 = vmatprep.subr.mxu0 0.0
        %1385 = vmatpush1.msra.mxu0 %v1373
        %1386 = vmatprep.subr.mxu0 0.0
        %1387 = vmatpush1.msra.mxu0 0.0
        %1388 = vmatprep.subr.mxu0 0.0
        %1389 = vmatpush1.msra.mxu0 0.0
        %1390 = vmatprep.subr.mxu0 0.0
        %1391 = vmatpush1.msra.mxu0 0.0
        %1392 = vmatprep.subr.mxu0 0.0
        %1393 = vmatpush1.msra.mxu0 0.0
        %1394 = vmatprep.subr.mxu0 0.0
        %1395 = vmatpush1.msra.mxu0 0.0
        %1396 = vmatprep.subr.mxu0 0.0
        %1397 = vmatpush1.msra.mxu0 0.0
        %1398 = vmatprep.subr.mxu0 0.0
        %1399 = vmatpush1.msra.mxu0 0.0
        %1400 = vmatprep.subr.mxu0 0.0
        %1401 = vmatpush1.msra.mxu0 0.0
        %1402 = vmatprep.subr.mxu0 0.0
        %1403 = vmatpush1.msra.mxu0 0.0
        %1404 = vmatprep.subr.mxu0 0.0
        %1405 = vmatpush1.msra.mxu0 0.0
        %1406 = vmatprep.subr.mxu0 0.0
        %1407 = vmatpush1.msra.mxu0 0.0
        %1408 = vmatprep.subr.mxu0 0.0
        %1409 = vmatpush1.msra.mxu0 0.0
        %1410 = vmatprep.subr.mxu0 0.0
        %1411 = vmatpush1.msra.mxu0 0.0
        %1412 = vmatprep.subr.mxu0 0.0
        %1413 = vmatpush1.msra.mxu0 0.0
        %1414 = vmatprep.subr.mxu0 0.0
        %1415 = vmatpush1.msra.mxu0 0.0
        %1416 = vmatprep.subr.mxu0 0.0
        %1417 = vmatpush1.msra.mxu0 0.0
        %1418 = vmatprep.subr.mxu0 0.0
        %1419 = vmatpush1.msra.mxu0 0.0
        %1420 = vmatprep.subr.mxu0 0.0
        %1421 = vmatpush1.msra.mxu0 0.0
        %1422 = vmatprep.subr.mxu0 0.0
        %1423 = vmatpush1.msra.mxu0 0.0
        %1424 = vmatprep.subr.mxu0 0.0
        %1425 = vmatpush1.msra.mxu0 0.0
        %1426 = vmatprep.subr.mxu0 0.0
        %1427 = vmatpush1.msra.mxu0 0.0
        %1428 = vmatprep.subr.mxu0 0.0
        %1429 = vmatpush1.msra.mxu0 0.0
        %1430 = vmatprep.subr.mxu0 0.0
        %1431 = vmatpush1.msra.mxu0 0.0
        %1432 = vmatprep.subr.mxu0 0.0
        %1433 = vmatpush1.msra.mxu0 0.0
        %1434 = vmatprep.subr.mxu0 0.0
        %1435 = vmatpush1.msra.mxu0 0.0
        %1436 = vmatprep.subr.mxu0 0.0
        %1437 = vmatpush1.msra.mxu0 0.0
        %1438 = vmatprep.subr.mxu0 0.0
        %1439 = vmatpush1.msra.mxu0 0.0
        %1440 = vmatprep.subr.mxu0 0.0
        %1441 = vmatpush1.msra.mxu0 0.0
        %1442 = vmatprep.mubr.f32.mxu0 0.0
        %1443 = vmatmul.mubr.f32.gmra.mrb[0].mxu0 %v1376
        %v1444 = vpop.f32.mrb[0].mxu0
        %v1445 = vadd.f32 0.0, %v1444
        %v1446 = vpop.f32.mrb[0].mxu0
        %1447 = vdwg.mxu0
        %1448 = vst.msk [vmem:[%s448] sm:$0xff] %vm1374, %v1445
        %s1449 = sand.u32 %s226, 1
        %s1450 = scalar_lea.sflag [#allocation5], %s1449
        %s1451 = sand.u32 %s226, 1
        %s1452 = smul.addr %s1451, 8
        %s1453 = scalar_lea.vmem [#allocation14], %s1452
        // Predicated region
        $region77: #{tpu_custom_call.1} parent=51 // pred_check
          %p1454 = pneg %p236
        $region78: #{tpu_custom_call.1} parent=51 // pred_check_branch
          %1456 = sbr.rel (%p1454) target = $region80
        $region79: #{tpu_custom_call.1} parent=51 // pred_region
          %s1458 = ssub.s32 128, 128
          %1459 = vsyncadd %s1450, %s1458
          %s1460 = smul.addr %s30, 128
          %s1461 = scalar_lea.hbm %s8, %s1460
          %s1463 = sshll.u32 %s1453, 4
          %s1464 = int_to_ptr.vmem [resolvable:$true] %s1463
          %1466 = dma.vmem_to_hbm [thread:$0]  %s1464, 128, %s1461, %s1450
        $region80: #{tpu_custom_call.1} parent=51 // pred_fallthru
          _
      $region52: #{tpu_custom_call.1} parent=5 // pred_fallthru
        _
      %p1467 = scmp.le.s32.totalorder 2, %s25
      // Predicated region
      $region81: #{tpu_custom_call.1} parent=5 // pred_check
        %p1468 = pneg %p1467
      $region82: #{tpu_custom_call.1} parent=5 // pred_check_branch
        %1470 = sbr.rel (%p1468) target = $region84
      $region83: #{tpu_custom_call.1} parent=5 // pred_region
        %s1471 = ssub.s32 %s25, 2
        // Predicated region
        $region85: #{tpu_custom_call.1} parent=83 // pred_check
          %p1472 = pneg %p242
        $region86: #{tpu_custom_call.1} parent=83 // pred_check_branch
          %1474 = sbr.rel (%p1472) target = $region88
        $region87: #{tpu_custom_call.1} parent=83 // pred_region
          %s1475 = sand.u32 %s227, 1
          %s1476 = scalar_lea.sflag [#allocation5], %s1475
          %s1477 = sand.u32 %s227, 1
          %s1478 = smul.addr %s1477, 8
          %s1479 = scalar_lea.vmem [#allocation14], %s1478
          %1480 = dma.done %s1476, 128
        $region88: #{tpu_custom_call.1} parent=83 // pred_fallthru
          _
      $region84: #{tpu_custom_call.1} parent=5 // pred_fallthru
        _
    $region6: #{tpu_custom_call.1} parent=1 // loop_footer
      %s29 = sadd.s32 1, %s25
    $region7: #{tpu_custom_call.1} parent=1 // loop_footer_branch
      %24 = sbr.rel target = $region3
    $region8: #{tpu_custom_call.1} parent=1 // loop_exit
      _
    %1481 = vsyncpa [#allocation4], 1
    %s1482 = scalar_lea.sflag [#allocation4], 1
    %1483 = vsyncpa %s1482, 1
    %1484 = vsyncpa [#allocation7], 1
    %s1485 = scalar_lea.sflag [#allocation7], 1
    %1486 = vsyncpa %s1485, 1
    %1487 = vsyncpa [#allocation10], 1
    %1488 = vsyncpa [#allocation13], 1
    %1489 = vsyncpa [#allocation5], 1
    %s1490 = scalar_lea.sflag [#allocation5], 1
    %1491 = vsyncpa %s1490, 1

</llo_original>
